<compile_context>
chip_gen: v7x
topology: tpu7x:2x2x1
jax: 0.10.0
libtpu: 0.0.40
codegen_flags: <defaults>
</compile_context>

<pallas_src>
import jax
import jax.numpy as jnp
from jax.experimental import pallas as pl
from jax.experimental.pallas import tpu as pltpu


def _round_up(x, m):
    return ((x + m - 1) // m) * m


# ----------------------------- Pallas kernels ------------------------------

def _conv_bias_relu_kernel(a_ref, w_ref, b_ref, o_ref):
    # a_ref: (TM, Kp) patches tile, w_ref: (Kp, Cp), b_ref: (1, Cp) f32,
    # o_ref: (TM, Cp).  Accumulate in f32 on the MXU, bias+ReLU in f32.
    acc = jnp.dot(a_ref[...], w_ref[...], preferred_element_type=jnp.float32)
    o_ref[...] = jnp.maximum(acc + b_ref[...], 0.0).astype(o_ref.dtype)


def conv_bias_relu(patches, w_mat, bias_row, *, tm=512):
    """patches: (M, Kp), w_mat: (Kp, Cp), bias_row: (1, Cp) -> (M, Cp)."""
    M, Kp = patches.shape
    _, Cp = w_mat.shape
    TM = M if M <= tm else tm  # TM == M (full dim) or a multiple of 8/128
    return pl.pallas_call(
        _conv_bias_relu_kernel,
        out_shape=jax.ShapeDtypeStruct((M, Cp), patches.dtype),
        grid=(pl.cdiv(M, TM),),
        in_specs=[
            pl.BlockSpec((TM, Kp), lambda i: (i, 0)),
            pl.BlockSpec((Kp, Cp), lambda i: (0, 0)),
            pl.BlockSpec((1, Cp), lambda i: (0, 0)),
        ],
        out_specs=pl.BlockSpec((TM, Cp), lambda i: (i, 0)),
        compiler_params=pltpu.CompilerParams(
            dimension_semantics=("parallel",)),
    )(patches, w_mat, bias_row)


def conv_bias_relu_mean(patches_npk, w_mat, bias_row, *, tp=512):
    """Fused conv3 + spatial mean.

    patches_npk: (N, P, Kp), w_mat: (Kp, Cp), bias_row: (1, Cp).
    Returns (N, Cp) = mean over P of ReLU(patches @ w + b).
    """
    N, P, Kp = patches_npk.shape
    _, Cp = w_mat.shape
    TP = P if P <= tp else tp
    inv_p = 1.0 / float(P)

    def kernel(a_ref, w_ref, b_ref, o_ref, acc_ref):
        t = pl.program_id(1)

        @pl.when(t == 0)
        def _():
            acc_ref[...] = jnp.zeros_like(acc_ref)

        s = jnp.dot(a_ref[0], w_ref[...], preferred_element_type=jnp.float32)
        r = jnp.maximum(s + b_ref[...], 0.0)                    # (TP, Cp) f32
        # Mask rows past the true P (partial last tile reads padded garbage).
        row = t * TP + jax.lax.broadcasted_iota(jnp.int32, (TP, 1), 0)
        r = jnp.where(row < P, r, 0.0)
        acc_ref[...] += jnp.sum(r, axis=0, keepdims=True)

        @pl.when(t == pl.num_programs(1) - 1)
        def _():
            o_ref[0] = (acc_ref[...] * inv_p).astype(o_ref.dtype)

    out = pl.pallas_call(
        kernel,
        out_shape=jax.ShapeDtypeStruct((N, 1, Cp), jnp.float32),
        grid=(N, pl.cdiv(P, TP)),
        in_specs=[
            pl.BlockSpec((1, TP, Kp), lambda n, t: (n, t, 0)),
            pl.BlockSpec((Kp, Cp), lambda n, t: (0, 0)),
            pl.BlockSpec((1, Cp), lambda n, t: (0, 0)),
        ],
        out_specs=pl.BlockSpec((1, 1, Cp), lambda n, t: (n, 0, 0)),
        scratch_shapes=[pltpu.VMEM((1, Cp), jnp.float32)],
        compiler_params=pltpu.CompilerParams(
            dimension_semantics=("parallel", "arbitrary")),
    )(patches_npk, w_mat, bias_row)
    return out.reshape(N, Cp)


# ------------------------------- JAX glue ----------------------------------

def _im2col_nhwc(h_pad, k, stride, k_pad):
    """h_pad: (N, Hp, Wp, C) spatially zero-padded NHWC input.

    Returns patches (N, OH*OW, k_pad) with the K axis ordered (kh, kw, Cin)
    and zero-padded to k_pad (a 128-multiple), plus OH, OW.
    """
    N, Hp, Wp, C = h_pad.shape
    OH = (Hp - k) // stride + 1
    OW = (Wp - k) // stride + 1
    cols = []
    for ki in range(k):
        for kj in range(k):
            cols.append(h_pad[:, ki:ki + stride * OH:stride,
                              kj:kj + stride * OW:stride, :])
    p = jnp.concatenate(cols, axis=-1)                  # (N, OH, OW, k*k*C)
    p = p.reshape(N, OH * OW, k * k * C)
    K = k * k * C
    if k_pad > K:
        p = jnp.pad(p, ((0, 0), (0, 0), (0, k_pad - K)))
    return p, OH, OW


def _weight_matrix(w, k_pad, c_pad, dtype):
    """w: (C_out, C_in, kh, kw) -> (k_pad, c_pad) with K ordered (kh,kw,Cin)."""
    c_out = w.shape[0]
    wm = jnp.transpose(w, (2, 3, 1, 0)).reshape(-1, c_out)
    K = wm.shape[0]
    wm = jnp.pad(wm, ((0, k_pad - K), (0, c_pad - c_out)))
    return wm.astype(dtype)


def _bias_row(b, c_pad):
    return jnp.pad(b, (0, c_pad - b.shape[0])).reshape(1, c_pad).astype(jnp.float32)


def style_encoder_forward(x, y, params, *, compute_dtype=jnp.float32):
    """x, y: (N, 3, H, W) float32 (PyTorch NCHW).  Returns (N, nf) float32."""
    stride = 2
    nf = params["w1"].shape[0]
    c_pad = max(128, _round_up(nf, 128))

    # NCHW -> NHWC once; activations stay NHWC (and in compute_dtype) after.
    h = jnp.concatenate([x, y], axis=1).transpose(0, 2, 3, 1).astype(compute_dtype)

    layers = [("w1", "b1", 7), ("w2", "b2", 3), ("w3", "b3", 3)]
    for li, (wk, bk, k) in enumerate(layers):
        w, b = params[wk], params[bk]
        c_in = h.shape[-1]
        k_pad = _round_up(k * k * c_in, 128)

        hp = jnp.pad(h, ((0, 0), (1, 1), (1, 1), (0, 0)))        # ZeroPad2d(1)
        patches, OH, OW = _im2col_nhwc(hp, k, stride, k_pad)     # (N, P, Kp)
        w_mat = _weight_matrix(w, k_pad, c_pad, compute_dtype)
        b_row = _bias_row(b, c_pad)
        N = patches.shape[0]

        if li < 2:
            out = conv_bias_relu(patches.reshape(N * OH * OW, k_pad),
                                 w_mat, b_row)                   # (M, Cp)
            # Stay NHWC; drop the zero-padded channels before next im2col.
            h = out.reshape(N, OH, OW, c_pad)[..., :nf]
        else:
            # conv3 fused with the spatial mean -> (N, Cp)
            pooled = conv_bias_relu_mean(patches, w_mat, b_row)
            return pooled[:, :nf].astype(jnp.float32)


def init_params(key, in_nc=6, nf=64):
    """Deterministic Kaiming-uniform-like init matching the Conv2d shapes."""
    def conv_init(k, shape):
        fan_in = shape[1] * shape[2] * shape[3]
        bound = 1.0 / jnp.sqrt(fan_in)
        kw_, kb_ = jax.random.split(k)
        w = jax.random.uniform(kw_, shape, jnp.float32, -bound, bound)
        b = jax.random.uniform(kb_, (shape[0],), jnp.float32, -bound, bound)
        return w, b

    k1, k2, k3 = jax.random.split(key, 3)
    w1, b1 = conv_init(k1, (nf, in_nc, 7, 7))
    w2, b2 = conv_init(k2, (nf, nf, 3, 3))
    w3, b3 = conv_init(k3, (nf, nf, 3, 3))
    return dict(w1=w1, b1=b1, w2=w2, b2=b2, w3=w3, b3=b3)


def _reference_forward(x, y, params):
    """Pure-JAX reference (lax.conv, NCHW) for the correctness check."""
    h = jnp.concatenate([x, y], axis=1)
    for w, b in [(params["w1"], params["b1"]),
                 (params["w2"], params["b2"]),
                 (params["w3"], params["b3"])]:
        hp = jnp.pad(h, ((0, 0), (0, 0), (1, 1), (1, 1)))
        h = jax.lax.conv_general_dilated(
            hp, w, window_strides=(2, 2), padding="VALID",
            dimension_numbers=("NCHW", "OIHW", "NCHW"),
            precision=jax.lax.Precision.HIGHEST)
        h = jnp.maximum(h + b[None, :, None, None], 0.0)
    return jnp.mean(h, axis=(2, 3))


if __name__ == "__main__":
    key = jax.random.PRNGKey(0)
    kx, ky, kp = jax.random.split(key, 3)

    N, H, W = 2, 16, 16
    x = jax.random.normal(kx, (N, 3, H, W), jnp.float32)
    y = jax.random.normal(ky, (N, 3, H, W), jnp.float32)
    params = init_params(kp, in_nc=6, nf=64)

    fwd = jax.jit(style_encoder_forward, static_argnames=("compute_dtype",))

    # f32 path, checked tightly against the HIGHEST-precision XLA reference.
    out = jax.block_until_ready(fwd(x, y, params))
    assert out.shape == (N, 64), out.shape
    ref = jax.block_until_ready(_reference_forward(x, y, params))
    assert jnp.allclose(out, ref, rtol=2e-2, atol=2e-2), (
        float(jnp.max(jnp.abs(out - ref))))

    # bf16 feed (v6e/v7x MXU path); accumulation stays f32 inside the kernel.
    out_bf16 = jax.block_until_ready(fwd(x, y, params,
                                         compute_dtype=jnp.bfloat16))
    assert out_bf16.shape == (N, 64), out_bf16.shape
    assert jnp.allclose(out_bf16, ref, rtol=1e-1, atol=1e-1), (
        float(jnp.max(jnp.abs(out_bf16 - ref))))

    print("KERNEL_OK")
</pallas_src>

<mosaic_0001>
module attributes {stable_mosaic.version = 11 : i64} {
  func.func @_conv_bias_relu_kernel(%arg0: i32, %arg1: memref<72x384xf32, #tpu.memory_space<vmem>>, %arg2: memref<384x128xf32, #tpu.memory_space<vmem>>, %arg3: memref<1x128xf32, #tpu.memory_space<vmem>>, %arg4: memref<72x128xf32, #tpu.memory_space<vmem>>) attributes {dimension_semantics = [#tpu.dimension_semantics<parallel>], iteration_bounds = array<i64: 1>, scalar_prefetch = 0 : i64, scratch_operands = 0 : i64, tpu.core_type = #tpu.core_type<tc>, window_params = [{transform_indices = @transform_0, window_bounds = array<i64: 72, 384>}, {pipeline_mode = #tpu.pipeline_mode<synchronous>, transform_indices = @transform_1, window_bounds = array<i64: 384, 128>}, {pipeline_mode = #tpu.pipeline_mode<synchronous>, transform_indices = @transform_2, window_bounds = array<i64: 1, 128>}, {transform_indices = @transform_3, window_bounds = array<i64: 72, 128>}]} {
    %c0 = arith.constant 0 : index
    %c0_0 = arith.constant 0 : index
    %0 = vector.load %arg1[%c0, %c0_0] : memref<72x384xf32, #tpu.memory_space<vmem>>, vector<72x384xf32>
    %c0_1 = arith.constant 0 : index
    %c0_2 = arith.constant 0 : index
    %1 = vector.load %arg2[%c0_1, %c0_2] : memref<384x128xf32, #tpu.memory_space<vmem>>, vector<384x128xf32>
    %cst = arith.constant dense<0.000000e+00> : vector<72x128xf32>
    %2 = tpu.matmul %0, %1, %cst {dimension_numbers = #tpu.dot_dimension_numbers<[1], [0], [0], [1], [0, 0, 1, 1], [], []>} : vector<72x384xf32>, vector<384x128xf32>, vector<72x128xf32> -> vector<72x128xf32>
    %c0_3 = arith.constant 0 : index
    %c0_4 = arith.constant 0 : index
    %3 = vector.load %arg3[%c0_3, %c0_4] : memref<1x128xf32, #tpu.memory_space<vmem>>, vector<1x128xf32>
    %4 = vector.broadcast %3 : vector<1x128xf32> to vector<72x128xf32>
    %5 = arith.addf %2, %4 : vector<72x128xf32>
    %cst_5 = arith.constant 0.000000e+00 : f32
    %6 = vector.broadcast %cst_5 : f32 to vector<72x128xf32>
    %7 = arith.maximumf %5, %6 : vector<72x128xf32>
    %c0_6 = arith.constant 0 : index
    %c0_7 = arith.constant 0 : index
    %8 = vector.load %arg4[%c0_6, %c0_7] : memref<72x128xf32, #tpu.memory_space<vmem>>, vector<72x128xf32>
    tpu.vector_store %arg4[%c0_6, %c0_7], %7 {strides = array<i32>} : memref<72x128xf32, #tpu.memory_space<vmem>>, vector<72x128xf32>,
    return
  }
  func.func @transform_0(%arg0: i32) -> (i32, i32) {
    %c0_i32 = arith.constant 0 : i32
    %c0_i32_0 = arith.constant 0 : i32
    return %arg0, %c0_i32 : i32, i32
  }
  func.func @transform_1(%arg0: i32) -> (i32, i32) {
    %c0_i32 = arith.constant 0 : i32
    %c0_i32_0 = arith.constant 0 : i32
    %c0_i32_1 = arith.constant 0 : i32
    return %c0_i32, %c0_i32_0 : i32, i32
  }
  func.func @transform_2(%arg0: i32) -> (i32, i32) {
    %c0_i32 = arith.constant 0 : i32
    %c0_i32_0 = arith.constant 0 : i32
    %c0_i32_1 = arith.constant 0 : i32
    return %c0_i32, %c0_i32_0 : i32, i32
  }
  func.func @transform_3(%arg0: i32) -> (i32, i32) {
    %c0_i32 = arith.constant 0 : i32
    %c0_i32_0 = arith.constant 0 : i32
    return %arg0, %c0_i32 : i32, i32
  }
}

module attributes {stable_mosaic.version = 11 : i64} {
  func.func @_conv_bias_relu_kernel(%arg0: i32, %arg1: memref<18x640xf32, #tpu.memory_space<vmem>>, %arg2: memref<640x128xf32, #tpu.memory_space<vmem>>, %arg3: memref<1x128xf32, #tpu.memory_space<vmem>>, %arg4: memref<18x128xf32, #tpu.memory_space<vmem>>) attributes {dimension_semantics = [#tpu.dimension_semantics<parallel>], iteration_bounds = array<i64: 1>, scalar_prefetch = 0 : i64, scratch_operands = 0 : i64, tpu.core_type = #tpu.core_type<tc>, window_params = [{transform_indices = @transform_0, window_bounds = array<i64: 18, 640>}, {pipeline_mode = #tpu.pipeline_mode<synchronous>, transform_indices = @transform_1, window_bounds = array<i64: 640, 128>}, {pipeline_mode = #tpu.pipeline_mode<synchronous>, transform_indices = @transform_2, window_bounds = array<i64: 1, 128>}, {transform_indices = @transform_3, window_bounds = array<i64: 18, 128>}]} {
    %c0 = arith.constant 0 : index
    %c0_0 = arith.constant 0 : index
    %0 = vector.load %arg1[%c0, %c0_0] : memref<18x640xf32, #tpu.memory_space<vmem>>, vector<18x640xf32>
    %c0_1 = arith.constant 0 : index
    %c0_2 = arith.constant 0 : index
    %1 = vector.load %arg2[%c0_1, %c0_2] : memref<640x128xf32, #tpu.memory_space<vmem>>, vector<640x128xf32>
    %cst = arith.constant dense<0.000000e+00> : vector<18x128xf32>
    %2 = tpu.matmul %0, %1, %cst {dimension_numbers = #tpu.dot_dimension_numbers<[1], [0], [0], [1], [0, 0, 1, 1], [], []>} : vector<18x640xf32>, vector<640x128xf32>, vector<18x128xf32> -> vector<18x128xf32>
    %c0_3 = arith.constant 0 : index
    %c0_4 = arith.constant 0 : index
    %3 = vector.load %arg3[%c0_3, %c0_4] : memref<1x128xf32, #tpu.memory_space<vmem>>, vector<1x128xf32>
    %4 = vector.broadcast %3 : vector<1x128xf32> to vector<18x128xf32>
    %5 = arith.addf %2, %4 : vector<18x128xf32>
    %cst_5 = arith.constant 0.000000e+00 : f32
    %6 = vector.broadcast %cst_5 : f32 to vector<18x128xf32>
    %7 = arith.maximumf %5, %6 : vector<18x128xf32>
    %c0_6 = arith.constant 0 : index
    %c0_7 = arith.constant 0 : index
    %8 = vector.load %arg4[%c0_6, %c0_7] : memref<18x128xf32, #tpu.memory_space<vmem>>, vector<18x128xf32>
    tpu.vector_store %arg4[%c0_6, %c0_7], %7 {strides = array<i32>} : memref<18x128xf32, #tpu.memory_space<vmem>>, vector<18x128xf32>,
    return
  }
  func.func @transform_0(%arg0: i32) -> (i32, i32) {
    %c0_i32 = arith.constant 0 : i32
    %c0_i32_0 = arith.constant 0 : i32
    return %arg0, %c0_i32 : i32, i32
  }
  func.func @transform_1(%arg0: i32) -> (i32, i32) {
    %c0_i32 = arith.constant 0 : i32
    %c0_i32_0 = arith.constant 0 : i32
    %c0_i32_1 = arith.constant 0 : i32
    return %c0_i32, %c0_i32_0 : i32, i32
  }
  func.func @transform_2(%arg0: i32) -> (i32, i32) {
    %c0_i32 = arith.constant 0 : i32
    %c0_i32_0 = arith.constant 0 : i32
    %c0_i32_1 = arith.constant 0 : i32
    return %c0_i32, %c0_i32_0 : i32, i32
  }
  func.func @transform_3(%arg0: i32) -> (i32, i32) {
    %c0_i32 = arith.constant 0 : i32
    %c0_i32_0 = arith.constant 0 : i32
    return %arg0, %c0_i32 : i32, i32
  }
}

module attributes {stable_mosaic.version = 11 : i64} {
  func.func @kernel(%arg0: i32, %arg1: i32, %arg2: memref<1x4x640xf32, #tpu.memory_space<vmem>>, %arg3: memref<640x128xf32, #tpu.memory_space<vmem>>, %arg4: memref<1x128xf32, #tpu.memory_space<vmem>>, %arg5: memref<1x1x128xf32, #tpu.memory_space<vmem>>, %arg6: memref<1x128xf32, #tpu.memory_space<vmem>>) attributes {dimension_semantics = [#tpu.dimension_semantics<parallel>, #tpu.dimension_semantics<arbitrary>], iteration_bounds = array<i64: 2, 1>, scalar_prefetch = 0 : i64, scratch_operands = 1 : i64, tpu.core_type = #tpu.core_type<tc>, window_params = [{transform_indices = @transform_0, window_bounds = array<i64: 1, 4, 640>}, {pipeline_mode = #tpu.pipeline_mode<synchronous>, transform_indices = @transform_1, window_bounds = array<i64: 640, 128>}, {pipeline_mode = #tpu.pipeline_mode<synchronous>, transform_indices = @transform_2, window_bounds = array<i64: 1, 128>}, {transform_indices = @transform_3, window_bounds = array<i64: 1, 1, 128>}]} {
    %c0_i32 = arith.constant 0 : i32
    %0 = arith.cmpi eq, %arg1, %c0_i32 : i32
    %1 = arith.extui %0 : i1 to i32
    %c0_i32_0 = arith.constant 0 : i32
    %2 = arith.cmpi ne, %1, %c0_i32_0 : i32
    scf.if %2 {
      %cst_17 = arith.constant 0.000000e+00 : f32
      %30 = vector.broadcast %cst_17 : f32 to vector<1x128xf32>
      %c0_18 = arith.constant 0 : index
      %c0_19 = arith.constant 0 : index
      %31 = vector.load %arg6[%c0_18, %c0_19] : memref<1x128xf32, #tpu.memory_space<vmem>>, vector<1x128xf32>
      tpu.vector_store %arg6[%c0_18, %c0_19], %30 {strides = array<i32>} : memref<1x128xf32, #tpu.memory_space<vmem>>, vector<1x128xf32>,
    } else {
    }
    %c0 = arith.constant 0 : index
    %c0_1 = arith.constant 0 : index
    %c0_2 = arith.constant 0 : index
    %3 = vector.load %arg2[%c0, %c0_1, %c0_2] : memref<1x4x640xf32, #tpu.memory_space<vmem>>, vector<1x4x640xf32>
    %4 = vector.shape_cast %3 : vector<1x4x640xf32> to vector<4x640xf32>
    %c0_3 = arith.constant 0 : index
    %c0_4 = arith.constant 0 : index
    %5 = vector.load %arg3[%c0_3, %c0_4] : memref<640x128xf32, #tpu.memory_space<vmem>>, vector<640x128xf32>
    %cst = arith.constant dense<0.000000e+00> : vector<4x128xf32>
    %6 = tpu.matmul %4, %5, %cst {dimension_numbers = #tpu.dot_dimension_numbers<[1], [0], [0], [1], [0, 0, 1, 1], [], []>} : vector<4x640xf32>, vector<640x128xf32>, vector<4x128xf32> -> vector<4x128xf32>
    %c0_5 = arith.constant 0 : index
    %c0_6 = arith.constant 0 : index
    %7 = vector.load %arg4[%c0_5, %c0_6] : memref<1x128xf32, #tpu.memory_space<vmem>>, vector<1x128xf32>
    %8 = vector.broadcast %7 : vector<1x128xf32> to vector<4x128xf32>
    %9 = arith.addf %6, %8 : vector<4x128xf32>
    %cst_7 = arith.constant 0.000000e+00 : f32
    %10 = vector.broadcast %cst_7 : f32 to vector<4x128xf32>
    %11 = arith.maximumf %9, %10 : vector<4x128xf32>
    %c4_i32 = arith.constant 4 : i32
    %12 = arith.muli %arg1, %c4_i32 : i32
    %13 = tpu.iota {dimensions = array<i32: 0>} : vector<4x1xi32>
    %14 = vector.broadcast %12 : i32 to vector<4x1xi32>
    %15 = arith.addi %14, %13 : vector<4x1xi32>
    %c4_i32_8 = arith.constant 4 : i32
    %16 = vector.broadcast %c4_i32_8 : i32 to vector<4x1xi32>
    %17 = arith.cmpi slt, %15, %16 : vector<4x1xi32>
    %cst_9 = arith.constant 0.000000e+00 : f32
    %18 = vector.shape_cast %17 : vector<4x1xi1> to vector<4x1xi1>
    %19 = vector.broadcast %18 : vector<4x1xi1> to vector<4x128xi1>
    %20 = vector.broadcast %cst_9 : f32 to vector<4x128xf32>
    %21 = arith.select %19, %11, %20 : vector<4x128xi1>, vector<4x128xf32>
    %c0_10 = arith.constant 0 : index
    %c0_11 = arith.constant 0 : index
    %22 = vector.load %arg6[%c0_10, %c0_11] : memref<1x128xf32, #tpu.memory_space<vmem>>, vector<1x128xf32>
    %cst_12 = arith.constant dense<0.000000e+00> : vector<128xf32>
    %23 = vector.multi_reduction <add>, %21, %cst_12 [0] : vector<4x128xf32> to vector<128xf32>
    %24 = vector.shape_cast %23 : vector<128xf32> to vector<1x128xf32>
    %25 = arith.addf %22, %24 : vector<1x128xf32>
    %c0_13 = arith.constant 0 : index
    %c0_14 = arith.constant 0 : index
    %26 = vector.load %arg6[%c0_13, %c0_14] : memref<1x128xf32, #tpu.memory_space<vmem>>, vector<1x128xf32>
    tpu.vector_store %arg6[%c0_13, %c0_14], %25 {strides = array<i32>} : memref<1x128xf32, #tpu.memory_space<vmem>>, vector<1x128xf32>,
    %c0_i32_15 = arith.constant 0 : i32
    %27 = arith.cmpi eq, %arg1, %c0_i32_15 : i32
    %28 = arith.extui %27 : i1 to i32
    %c0_i32_16 = arith.constant 0 : i32
    %29 = arith.cmpi ne, %28, %c0_i32_16 : i32
    scf.if %29 {
      %c0_17 = arith.constant 0 : index
      %c0_18 = arith.constant 0 : index
      %30 = vector.load %arg6[%c0_17, %c0_18] : memref<1x128xf32, #tpu.memory_space<vmem>>, vector<1x128xf32>
      %cst_19 = arith.constant 2.500000e-01 : f32
      %31 = vector.broadcast %cst_19 : f32 to vector<1x128xf32>
      %32 = arith.mulf %30, %31 : vector<1x128xf32>
      %c0_20 = arith.constant 0 : index
      %c0_21 = arith.constant 0 : index
      %c0_22 = arith.constant 0 : index
      %33 = vector.load %arg5[%c0_20, %c0_21, %c0_22] : memref<1x1x128xf32, #tpu.memory_space<vmem>>, vector<1x1x128xf32>
      %34 = vector.shape_cast %33 : vector<1x1x128xf32> to vector<1x128xf32>
      %35 = vector.shape_cast %32 : vector<1x128xf32> to vector<1x1x128xf32>
      tpu.vector_store %arg5[%c0_20, %c0_21, %c0_22], %35 {strides = array<i32>} : memref<1x1x128xf32, #tpu.memory_space<vmem>>, vector<1x1x128xf32>,
    } else {
    }
    return
  }
  func.func @transform_0(%arg0: i32, %arg1: i32) -> (i32, i32, i32) {
    %c0_i32 = arith.constant 0 : i32
    %c0_i32_0 = arith.constant 0 : i32
    return %arg0, %arg1, %c0_i32 : i32, i32, i32
  }
  func.func @transform_1(%arg0: i32, %arg1: i32) -> (i32, i32) {
    %c0_i32 = arith.constant 0 : i32
    %c0_i32_0 = arith.constant 0 : i32
    %c0_i32_1 = arith.constant 0 : i32
    return %c0_i32, %c0_i32_0 : i32, i32
  }
  func.func @transform_2(%arg0: i32, %arg1: i32) -> (i32, i32) {
    %c0_i32 = arith.constant 0 : i32
    %c0_i32_0 = arith.constant 0 : i32
    %c0_i32_1 = arith.constant 0 : i32
    return %c0_i32, %c0_i32_0 : i32, i32
  }
  func.func @transform_3(%arg0: i32, %arg1: i32) -> (i32, i32, i32) {
    %c0_i32 = arith.constant 0 : i32
    %c0_i32_0 = arith.constant 0 : i32
    %c0_i32_1 = arith.constant 0 : i32
    return %arg0, %c0_i32, %c0_i32_0 : i32, i32, i32
  }
}

</mosaic_0001>

<llo_original>
// kernel: style_encoder_forward.4
$region0: #{style_encoder_forward.4}
  #allocation0 [shape = 'u32[]', space=smem, size = 0x4, offset = 0x4, fixed_abs, tag = 'smem constant byte address 0x4 - core index']
  #allocation1 [shape = 'u32[144,128]{1,0:T(1,128)}', space=vmem, size = 0x12000, scoped, tag = 'internal scratch']
  %s0 = inlined_call_operand.vmem [shape: f32[18,640], index: 0, kind: input, shape index: {}]
  %s1 = inlined_call_operand.vmem [shape: f32[640,128], index: 1, kind: input, shape index: {}]
  %s2 = inlined_call_operand.vmem [shape: f32[1,128], index: 2, kind: input, shape index: {}]
  %s3 = inlined_call_operand.vmem [shape: f32[18,128], index: 3, kind: output, shape index: {}]
  %s4 = sld [smem:[#allocation0]]
  $region22: #{style_encoder_forward.4} parent=0
    _
  %s6 = ssub.s32 1, %s4
  %s7 = scalar_select 0, %s6, %s4
  // Predicated region
  $region2: #{style_encoder_forward.4} parent=0 // pred_check
    _
  $region3: #{style_encoder_forward.4} parent=0 // pred_check_branch
    %9 = sbr.rel (0) target = $region5
  $region4: #{style_encoder_forward.4} parent=0 // pred_region
    _
  $region5: #{style_encoder_forward.4} parent=0 // pred_fallthru
    _
  // Predicated region
  $region6: #{style_encoder_forward.4} parent=0 // pred_check
    _
  $region7: #{style_encoder_forward.4} parent=0 // pred_check_branch
    %11 = sbr.rel (0) target = $region9
  $region8: #{style_encoder_forward.4} parent=0 // pred_region
    _
  $region9: #{style_encoder_forward.4} parent=0 // pred_fallthru
    _
  // Predicated region
  $region10: #{style_encoder_forward.4} parent=0 // pred_check
    _
  $region11: #{style_encoder_forward.4} parent=0 // pred_check_branch
    %13 = sbr.rel (0) target = $region13
  $region12: #{style_encoder_forward.4} parent=0 // pred_region
    _
  $region13: #{style_encoder_forward.4} parent=0 // pred_fallthru
    _
  %v14 = vld [vmem:[%s0] sm:$0xff]
  %v15 = vld [vmem:[%s0 + $0x8] sm:$0xff]
  %v16 = vld [vmem:[%s0 + $0x10] sm:$0xff]
  %v17 = vld [vmem:[%s0 + $0x18] sm:$0xff]
  %v18 = vld [vmem:[%s0 + $0x20] sm:$0xff]
  %v19 = vld [vmem:[%s0 + $0x28] sm:$0xff]
  %v20 = vld [vmem:[%s0 + $0x30] sm:$0xff]
  %v21 = vld [vmem:[%s0 + $0x38] sm:$0xff]
  %v22 = vld [vmem:[%s0 + $0x40] sm:$0xff]
  %v23 = vld [vmem:[%s0 + $0x48] sm:$0xff]
  %v24 = vld [vmem:[%s0 + $0x50] sm:$0x3]
  %v25 = vld [vmem:[%s0 + $0x58] sm:$0x3]
  %v26 = vld [vmem:[%s0 + $0x60] sm:$0x3]
  %v27 = vld [vmem:[%s0 + $0x68] sm:$0x3]
  %v28 = vld [vmem:[%s0 + $0x70] sm:$0x3]
  %v29 = vld [vmem:[%s1] sm:$0xff]
  %v30 = vld [vmem:[%s1 + $0x8] sm:$0xff]
  %v31 = vld [vmem:[%s1 + $0x10] sm:$0xff]
  %v32 = vld [vmem:[%s1 + $0x18] sm:$0xff]
  %v33 = vld [vmem:[%s1 + $0x20] sm:$0xff]
  %v34 = vld [vmem:[%s1 + $0x28] sm:$0xff]
  %v35 = vld [vmem:[%s1 + $0x30] sm:$0xff]
  %v36 = vld [vmem:[%s1 + $0x38] sm:$0xff]
  %v37 = vld [vmem:[%s1 + $0x40] sm:$0xff]
  %v38 = vld [vmem:[%s1 + $0x48] sm:$0xff]
  %v39 = vld [vmem:[%s1 + $0x50] sm:$0xff]
  %v40 = vld [vmem:[%s1 + $0x58] sm:$0xff]
  %v41 = vld [vmem:[%s1 + $0x60] sm:$0xff]
  %v42 = vld [vmem:[%s1 + $0x68] sm:$0xff]
  %v43 = vld [vmem:[%s1 + $0x70] sm:$0xff]
  %v44 = vld [vmem:[%s1 + $0x78] sm:$0xff]
  %v45 = vld [vmem:[%s1 + $0x80] sm:$0xff]
  %v46 = vld [vmem:[%s1 + $0x88] sm:$0xff]
  %v47 = vld [vmem:[%s1 + $0x90] sm:$0xff]
  %v48 = vld [vmem:[%s1 + $0x98] sm:$0xff]
  %v49 = vld [vmem:[%s1 + $0xa0] sm:$0xff]
  %v50 = vld [vmem:[%s1 + $0xa8] sm:$0xff]
  %v51 = vld [vmem:[%s1 + $0xb0] sm:$0xff]
  %v52 = vld [vmem:[%s1 + $0xb8] sm:$0xff]
  %v53 = vld [vmem:[%s1 + $0xc0] sm:$0xff]
  %v54 = vld [vmem:[%s1 + $0xc8] sm:$0xff]
  %v55 = vld [vmem:[%s1 + $0xd0] sm:$0xff]
  %v56 = vld [vmem:[%s1 + $0xd8] sm:$0xff]
  %v57 = vld [vmem:[%s1 + $0xe0] sm:$0xff]
  %v58 = vld [vmem:[%s1 + $0xe8] sm:$0xff]
  %v59 = vld [vmem:[%s1 + $0xf0] sm:$0xff]
  %v60 = vld [vmem:[%s1 + $0xf8] sm:$0xff]
  %v61 = vld [vmem:[%s1 + $0x100] sm:$0xff]
  %v62 = vld [vmem:[%s1 + $0x108] sm:$0xff]
  %v63 = vld [vmem:[%s1 + $0x110] sm:$0xff]
  %v64 = vld [vmem:[%s1 + $0x118] sm:$0xff]
  %v65 = vld [vmem:[%s1 + $0x120] sm:$0xff]
  %v66 = vld [vmem:[%s1 + $0x128] sm:$0xff]
  %v67 = vld [vmem:[%s1 + $0x130] sm:$0xff]
  %v68 = vld [vmem:[%s1 + $0x138] sm:$0xff]
  %v69 = vld [vmem:[%s1 + $0x140] sm:$0xff]
  %v70 = vld [vmem:[%s1 + $0x148] sm:$0xff]
  %v71 = vld [vmem:[%s1 + $0x150] sm:$0xff]
  %v72 = vld [vmem:[%s1 + $0x158] sm:$0xff]
  %v73 = vld [vmem:[%s1 + $0x160] sm:$0xff]
  %v74 = vld [vmem:[%s1 + $0x168] sm:$0xff]
  %v75 = vld [vmem:[%s1 + $0x170] sm:$0xff]
  %v76 = vld [vmem:[%s1 + $0x178] sm:$0xff]
  %v77 = vld [vmem:[%s1 + $0x180] sm:$0xff]
  %v78 = vld [vmem:[%s1 + $0x188] sm:$0xff]
  %v79 = vld [vmem:[%s1 + $0x190] sm:$0xff]
  %v80 = vld [vmem:[%s1 + $0x198] sm:$0xff]
  %v81 = vld [vmem:[%s1 + $0x1a0] sm:$0xff]
  %v82 = vld [vmem:[%s1 + $0x1a8] sm:$0xff]
  %v83 = vld [vmem:[%s1 + $0x1b0] sm:$0xff]
  %v84 = vld [vmem:[%s1 + $0x1b8] sm:$0xff]
  %v85 = vld [vmem:[%s1 + $0x1c0] sm:$0xff]
  %v86 = vld [vmem:[%s1 + $0x1c8] sm:$0xff]
  %v87 = vld [vmem:[%s1 + $0x1d0] sm:$0xff]
  %v88 = vld [vmem:[%s1 + $0x1d8] sm:$0xff]
  %v89 = vld [vmem:[%s1 + $0x1e0] sm:$0xff]
  %v90 = vld [vmem:[%s1 + $0x1e8] sm:$0xff]
  %v91 = vld [vmem:[%s1 + $0x1f0] sm:$0xff]
  %v92 = vld [vmem:[%s1 + $0x1f8] sm:$0xff]
  %v93 = vld [vmem:[%s1 + $0x200] sm:$0xff]
  %v94 = vld [vmem:[%s1 + $0x208] sm:$0xff]
  %v95 = vld [vmem:[%s1 + $0x210] sm:$0xff]
  %v96 = vld [vmem:[%s1 + $0x218] sm:$0xff]
  %v97 = vld [vmem:[%s1 + $0x220] sm:$0xff]
  %v98 = vld [vmem:[%s1 + $0x228] sm:$0xff]
  %v99 = vld [vmem:[%s1 + $0x230] sm:$0xff]
  %v100 = vld [vmem:[%s1 + $0x238] sm:$0xff]
  %v101 = vld [vmem:[%s1 + $0x240] sm:$0xff]
  %v102 = vld [vmem:[%s1 + $0x248] sm:$0xff]
  %v103 = vld [vmem:[%s1 + $0x250] sm:$0xff]
  %v104 = vld [vmem:[%s1 + $0x258] sm:$0xff]
  %v105 = vld [vmem:[%s1 + $0x260] sm:$0xff]
  %v106 = vld [vmem:[%s1 + $0x268] sm:$0xff]
  %v107 = vld [vmem:[%s1 + $0x270] sm:$0xff]
  %v108 = vld [vmem:[%s1 + $0x278] sm:$0xff]
  %v109 = vld [vmem:[%s2] sm:$0x1]
  %v111 = vlaneseq
  %v112 = vshrl.u32 %v111, 7
  %v113 = vsub.s32 0, %v112
  %v114 = vrot.slane %v109, %v113
  %116 = vmatprep.subr.mxu0 0.0
  %117 = vmatpush1.msra.mxu0 %v29
  %118 = vmatprep.subr.mxu0 0.0
  %119 = vmatpush1.msra.mxu0 %v30
  %120 = vmatprep.subr.mxu0 0.0
  %121 = vmatpush1.msra.mxu0 %v31
  %122 = vmatprep.subr.mxu0 0.0
  %123 = vmatpush1.msra.mxu0 %v32
  %124 = vmatprep.subr.mxu0 0.0
  %125 = vmatpush1.msra.mxu0 %v33
  %126 = vmatprep.subr.mxu0 0.0
  %127 = vmatpush1.msra.mxu0 %v34
  %128 = vmatprep.subr.mxu0 0.0
  %129 = vmatpush1.msra.mxu0 %v35
  %130 = vmatprep.subr.mxu0 0.0
  %131 = vmatpush1.msra.mxu0 %v36
  %132 = vmatprep.subr.mxu0 0.0
  %133 = vmatpush1.msra.mxu0 %v37
  %134 = vmatprep.subr.mxu0 0.0
  %135 = vmatpush1.msra.mxu0 %v38
  %136 = vmatprep.subr.mxu0 0.0
  %137 = vmatpush1.msra.mxu0 %v39
  %138 = vmatprep.subr.mxu0 0.0
  %139 = vmatpush1.msra.mxu0 %v40
  %140 = vmatprep.subr.mxu0 0.0
  %141 = vmatpush1.msra.mxu0 %v41
  %142 = vmatprep.subr.mxu0 0.0
  %143 = vmatpush1.msra.mxu0 %v42
  %144 = vmatprep.subr.mxu0 0.0
  %145 = vmatpush1.msra.mxu0 %v43
  %146 = vmatprep.subr.mxu0 0.0
  %147 = vmatpush1.msra.mxu0 %v44
  %148 = vmatprep.subr.mxu0 0.0
  %149 = vmatpush1.msra.mxu0 %v45
  %150 = vmatprep.subr.mxu0 0.0
  %151 = vmatpush1.msra.mxu0 %v46
  %152 = vmatprep.subr.mxu0 0.0
  %153 = vmatpush1.msra.mxu0 %v47
  %154 = vmatprep.subr.mxu0 0.0
  %155 = vmatpush1.msra.mxu0 %v48
  %156 = vmatprep.subr.mxu0 0.0
  %157 = vmatpush1.msra.mxu0 %v49
  %158 = vmatprep.subr.mxu0 0.0
  %159 = vmatpush1.msra.mxu0 %v50
  %160 = vmatprep.subr.mxu0 0.0
  %161 = vmatpush1.msra.mxu0 %v51
  %162 = vmatprep.subr.mxu0 0.0
  %163 = vmatpush1.msra.mxu0 %v52
  %164 = vmatprep.subr.mxu0 0.0
  %165 = vmatpush1.msra.mxu0 %v53
  %166 = vmatprep.subr.mxu0 0.0
  %167 = vmatpush1.msra.mxu0 %v54
  %168 = vmatprep.subr.mxu0 0.0
  %169 = vmatpush1.msra.mxu0 %v55
  %170 = vmatprep.subr.mxu0 0.0
  %171 = vmatpush1.msra.mxu0 %v56
  %172 = vmatprep.subr.mxu0 0.0
  %173 = vmatpush1.msra.mxu0 %v57
  %174 = vmatprep.subr.mxu0 0.0
  %175 = vmatpush1.msra.mxu0 %v58
  %176 = vmatprep.subr.mxu0 0.0
  %177 = vmatpush1.msra.mxu0 %v59
  %178 = vmatprep.subr.mxu0 0.0
  %179 = vmatpush1.msra.mxu0 %v60
  %180 = vmatprep.mubr.f32.mxu0 %v15
  %181 = vmatmul.mubr.f32.gmra.mrb[0].mxu0 %v14
  %v182 = vpop.f32.mrb[0].mxu0
  %v183 = vadd.f32 %v114, %v182
  %v184 = vpop.f32.mrb[0].mxu0
  %185 = vmatprep.mubr.f32.mxu0 %v20
  %186 = vmatmul.mubr.f32.gmra.mrb[0].mxu0 %v19
  %v187 = vpop.f32.mrb[0].mxu0
  %v188 = vadd.f32 %v114, %v187
  %v189 = vpop.f32.mrb[0].mxu0
  %190 = vmatprep.mubr.f32.mxu0 %v25
  %191 = vmatmul.mubr.f32.gmra.mrb[0].mxu0 %v24
  %v192 = vpop.f32.mrb[0].mxu0
  %v193 = vadd.f32 %v114, %v192
  %v194 = vpop.f32.mrb[0].mxu0
  %195 = vdwg.mxu0
  %196 = vmatprep.subr.mxu0 0.0
  %197 = vmatpush1.msra.mxu0 %v61
  %198 = vmatprep.subr.mxu0 0.0
  %199 = vmatpush1.msra.mxu0 %v62
  %200 = vmatprep.subr.mxu0 0.0
  %201 = vmatpush1.msra.mxu0 %v63
  %202 = vmatprep.subr.mxu0 0.0
  %203 = vmatpush1.msra.mxu0 %v64
  %204 = vmatprep.subr.mxu0 0.0
  %205 = vmatpush1.msra.mxu0 %v65
  %206 = vmatprep.subr.mxu0 0.0
  %207 = vmatpush1.msra.mxu0 %v66
  %208 = vmatprep.subr.mxu0 0.0
  %209 = vmatpush1.msra.mxu0 %v67
  %210 = vmatprep.subr.mxu0 0.0
  %211 = vmatpush1.msra.mxu0 %v68
  %212 = vmatprep.subr.mxu0 0.0
  %213 = vmatpush1.msra.mxu0 %v69
  %214 = vmatprep.subr.mxu0 0.0
  %215 = vmatpush1.msra.mxu0 %v70
  %216 = vmatprep.subr.mxu0 0.0
  %217 = vmatpush1.msra.mxu0 %v71
  %218 = vmatprep.subr.mxu0 0.0
  %219 = vmatpush1.msra.mxu0 %v72
  %220 = vmatprep.subr.mxu0 0.0
  %221 = vmatpush1.msra.mxu0 %v73
  %222 = vmatprep.subr.mxu0 0.0
  %223 = vmatpush1.msra.mxu0 %v74
  %224 = vmatprep.subr.mxu0 0.0
  %225 = vmatpush1.msra.mxu0 %v75
  %226 = vmatprep.subr.mxu0 0.0
  %227 = vmatpush1.msra.mxu0 %v76
  %228 = vmatprep.subr.mxu0 0.0
  %229 = vmatpush1.msra.mxu0 %v77
  %230 = vmatprep.subr.mxu0 0.0
  %231 = vmatpush1.msra.mxu0 %v78
  %232 = vmatprep.subr.mxu0 0.0
  %233 = vmatpush1.msra.mxu0 %v79
  %234 = vmatprep.subr.mxu0 0.0
  %235 = vmatpush1.msra.mxu0 %v80
  %236 = vmatprep.subr.mxu0 0.0
  %237 = vmatpush1.msra.mxu0 %v81
  %238 = vmatprep.subr.mxu0 0.0
  %239 = vmatpush1.msra.mxu0 %v82
  %240 = vmatprep.subr.mxu0 0.0
  %241 = vmatpush1.msra.mxu0 %v83
  %242 = vmatprep.subr.mxu0 0.0
  %243 = vmatpush1.msra.mxu0 %v84
  %244 = vmatprep.subr.mxu0 0.0
  %245 = vmatpush1.msra.mxu0 %v85
  %246 = vmatprep.subr.mxu0 0.0
  %247 = vmatpush1.msra.mxu0 %v86
  %248 = vmatprep.subr.mxu0 0.0
  %249 = vmatpush1.msra.mxu0 %v87
  %250 = vmatprep.subr.mxu0 0.0
  %251 = vmatpush1.msra.mxu0 %v88
  %252 = vmatprep.subr.mxu0 0.0
  %253 = vmatpush1.msra.mxu0 %v89
  %254 = vmatprep.subr.mxu0 0.0
  %255 = vmatpush1.msra.mxu0 %v90
  %256 = vmatprep.subr.mxu0 0.0
  %257 = vmatpush1.msra.mxu0 %v91
  %258 = vmatprep.subr.mxu0 0.0
  %259 = vmatpush1.msra.mxu0 %v92
  %260 = vmatprep.mubr.f32.mxu0 %v17
  %261 = vmatmul.mubr.f32.gmra.mrb[0].mxu0 %v16
  %v262 = vpop.f32.mrb[0].mxu0
  %v263 = vadd.f32 %v183, %v262
  %v264 = vpop.f32.mrb[0].mxu0
  %265 = vmatprep.mubr.f32.mxu0 %v22
  %266 = vmatmul.mubr.f32.gmra.mrb[0].mxu0 %v21
  %v267 = vpop.f32.mrb[0].mxu0
  %v268 = vadd.f32 %v188, %v267
  %v269 = vpop.f32.mrb[0].mxu0
  %270 = vmatprep.mubr.f32.mxu0 %v27
  %271 = vmatmul.mubr.f32.gmra.mrb[0].mxu0 %v26
  %v272 = vpop.f32.mrb[0].mxu0
  %v273 = vadd.f32 %v193, %v272
  %v274 = vpop.f32.mrb[0].mxu0
  %275 = vdwg.mxu0
  %276 = vmatprep.subr.mxu0 0.0
  %277 = vmatpush1.msra.mxu0 %v93
  %278 = vmatprep.subr.mxu0 0.0
  %279 = vmatpush1.msra.mxu0 %v94
  %280 = vmatprep.subr.mxu0 0.0
  %281 = vmatpush1.msra.mxu0 %v95
  %282 = vmatprep.subr.mxu0 0.0
  %283 = vmatpush1.msra.mxu0 %v96
  %284 = vmatprep.subr.mxu0 0.0
  %285 = vmatpush1.msra.mxu0 %v97
  %286 = vmatprep.subr.mxu0 0.0
  %287 = vmatpush1.msra.mxu0 %v98
  %288 = vmatprep.subr.mxu0 0.0
  %289 = vmatpush1.msra.mxu0 %v99
  %290 = vmatprep.subr.mxu0 0.0
  %291 = vmatpush1.msra.mxu0 %v100
  %292 = vmatprep.subr.mxu0 0.0
  %293 = vmatpush1.msra.mxu0 %v101
  %294 = vmatprep.subr.mxu0 0.0
  %295 = vmatpush1.msra.mxu0 %v102
  %296 = vmatprep.subr.mxu0 0.0
  %297 = vmatpush1.msra.mxu0 %v103
  %298 = vmatprep.subr.mxu0 0.0
  %299 = vmatpush1.msra.mxu0 %v104
  %300 = vmatprep.subr.mxu0 0.0
  %301 = vmatpush1.msra.mxu0 %v105
  %302 = vmatprep.subr.mxu0 0.0
  %303 = vmatpush1.msra.mxu0 %v106
  %304 = vmatprep.subr.mxu0 0.0
  %305 = vmatpush1.msra.mxu0 %v107
  %306 = vmatprep.subr.mxu0 0.0
  %307 = vmatpush1.msra.mxu0 %v108
  %308 = vmatprep.subr.mxu0 0.0
  %309 = vmatpush1.msra.mxu0 0.0
  %310 = vmatprep.subr.mxu0 0.0
  %311 = vmatpush1.msra.mxu0 0.0
  %312 = vmatprep.subr.mxu0 0.0
  %313 = vmatpush1.msra.mxu0 0.0
  %314 = vmatprep.subr.mxu0 0.0
  %315 = vmatpush1.msra.mxu0 0.0
  %316 = vmatprep.subr.mxu0 0.0
  %317 = vmatpush1.msra.mxu0 0.0
  %318 = vmatprep.subr.mxu0 0.0
  %319 = vmatpush1.msra.mxu0 0.0
  %320 = vmatprep.subr.mxu0 0.0
  %321 = vmatpush1.msra.mxu0 0.0
  %322 = vmatprep.subr.mxu0 0.0
  %323 = vmatpush1.msra.mxu0 0.0
  %324 = vmatprep.subr.mxu0 0.0
  %325 = vmatpush1.msra.mxu0 0.0
  %326 = vmatprep.subr.mxu0 0.0
  %327 = vmatpush1.msra.mxu0 0.0
  %328 = vmatprep.subr.mxu0 0.0
  %329 = vmatpush1.msra.mxu0 0.0
  %330 = vmatprep.subr.mxu0 0.0
  %331 = vmatpush1.msra.mxu0 0.0
  %332 = vmatprep.subr.mxu0 0.0
  %333 = vmatpush1.msra.mxu0 0.0
  %334 = vmatprep.subr.mxu0 0.0
  %335 = vmatpush1.msra.mxu0 0.0
  %336 = vmatprep.subr.mxu0 0.0
  %337 = vmatpush1.msra.mxu0 0.0
  %338 = vmatprep.subr.mxu0 0.0
  %339 = vmatpush1.msra.mxu0 0.0
  %340 = vmatprep.mubr.f32.mxu0 0.0
  %341 = vmatmul.mubr.f32.gmra.mrb[0].mxu0 %v18
  %v342 = vpop.f32.mrb[0].mxu0
  %v343 = vadd.f32 %v263, %v342
  %v344 = vpop.f32.mrb[0].mxu0
  %345 = vmatprep.mubr.f32.mxu0 0.0
  %346 = vmatmul.mubr.f32.gmra.mrb[0].mxu0 %v23
  %v347 = vpop.f32.mrb[0].mxu0
  %v348 = vadd.f32 %v268, %v347
  %v349 = vpop.f32.mrb[0].mxu0
  %350 = vmatprep.mubr.f32.mxu0 0.0
  %351 = vmatmul.mubr.f32.gmra.mrb[0].mxu0 %v28
  %v352 = vpop.f32.mrb[0].mxu0
  %v353 = vadd.f32 %v273, %v352
  %v354 = vpop.f32.mrb[0].mxu0
  %355 = vdwg.mxu0
  %v356 = vmax.f32 %v343, 0.0
  %v357 = vmax.f32 %v348, 0.0
  %v358 = vmax.f32 %v353, 0.0
  %359 = vst [vmem:[%s3] sm:$0xff] %v356
  %360 = vst [vmem:[%s3 + $0x8] sm:$0xff] %v357
  %361 = vst [vmem:[%s3 + $0x10] sm:$0x3] %v358
  // Predicated region
  $region14: #{style_encoder_forward.4} parent=0 // pred_check
    _
  $region15: #{style_encoder_forward.4} parent=0 // pred_check_branch
    %363 = sbr.rel (0) target = $region17
  $region16: #{style_encoder_forward.4} parent=0 // pred_region
    _
  $region17: #{style_encoder_forward.4} parent=0 // pred_fallthru
    _
  // Predicated region
  $region18: #{style_encoder_forward.4} parent=0 // pred_check
    _
  $region19: #{style_encoder_forward.4} parent=0 // pred_check_branch
    %365 = sbr.rel (0) target = $region21
  $region20: #{style_encoder_forward.4} parent=0 // pred_region
    _
  $region21: #{style_encoder_forward.4} parent=0 // pred_fallthru
    _

// kernel: style_encoder_forward.3
$region0: #{style_encoder_forward.3}
  #allocation0 [shape = 'u32[]', space=smem, size = 0x4, offset = 0x4, fixed_abs, tag = 'smem constant byte address 0x4 - core index']
  #allocation1 [shape = 'u32[144,128]{1,0:T(1,128)}', space=vmem, size = 0x12000, scoped, tag = 'internal scratch']
  %s0 = inlined_call_operand.vmem [shape: f32[72,384], index: 0, kind: input, shape index: {}]
  %s1 = inlined_call_operand.vmem [shape: f32[384,128], index: 1, kind: input, shape index: {}]
  %s2 = inlined_call_operand.vmem [shape: f32[1,128], index: 2, kind: input, shape index: {}]
  %s3 = inlined_call_operand.vmem [shape: f32[72,128], index: 3, kind: output, shape index: {}]
  %s4 = sld [smem:[#allocation0]]
  $region22: #{style_encoder_forward.3} parent=0
    _
  %s6 = ssub.s32 1, %s4
  %s7 = scalar_select 0, %s6, %s4
  // Predicated region
  $region2: #{style_encoder_forward.3} parent=0 // pred_check
    _
  $region3: #{style_encoder_forward.3} parent=0 // pred_check_branch
    %9 = sbr.rel (0) target = $region5
  $region4: #{style_encoder_forward.3} parent=0 // pred_region
    _
  $region5: #{style_encoder_forward.3} parent=0 // pred_fallthru
    _
  // Predicated region
  $region6: #{style_encoder_forward.3} parent=0 // pred_check
    _
  $region7: #{style_encoder_forward.3} parent=0 // pred_check_branch
    %11 = sbr.rel (0) target = $region9
  $region8: #{style_encoder_forward.3} parent=0 // pred_region
    _
  $region9: #{style_encoder_forward.3} parent=0 // pred_fallthru
    _
  // Predicated region
  $region10: #{style_encoder_forward.3} parent=0 // pred_check
    _
  $region11: #{style_encoder_forward.3} parent=0 // pred_check_branch
    %13 = sbr.rel (0) target = $region13
  $region12: #{style_encoder_forward.3} parent=0 // pred_region
    _
  $region13: #{style_encoder_forward.3} parent=0 // pred_fallthru
    _
  %v14 = vld [vmem:[%s0] sm:$0xff]
  %v15 = vld [vmem:[%s0 + $0x8] sm:$0xff]
  %v16 = vld [vmem:[%s0 + $0x10] sm:$0xff]
  %v17 = vld [vmem:[%s0 + $0x18] sm:$0xff]
  %v18 = vld [vmem:[%s0 + $0x20] sm:$0xff]
  %v19 = vld [vmem:[%s0 + $0x28] sm:$0xff]
  %v20 = vld [vmem:[%s0 + $0x30] sm:$0xff]
  %v21 = vld [vmem:[%s0 + $0x38] sm:$0xff]
  %v22 = vld [vmem:[%s0 + $0x40] sm:$0xff]
  %v23 = vld [vmem:[%s0 + $0x48] sm:$0xff]
  %v24 = vld [vmem:[%s0 + $0x50] sm:$0xff]
  %v25 = vld [vmem:[%s0 + $0x58] sm:$0xff]
  %v26 = vld [vmem:[%s0 + $0x60] sm:$0xff]
  %v27 = vld [vmem:[%s0 + $0x68] sm:$0xff]
  %v28 = vld [vmem:[%s0 + $0x70] sm:$0xff]
  %v29 = vld [vmem:[%s0 + $0x78] sm:$0xff]
  %v30 = vld [vmem:[%s0 + $0x80] sm:$0xff]
  %v31 = vld [vmem:[%s0 + $0x88] sm:$0xff]
  %v32 = vld [vmem:[%s0 + $0x90] sm:$0xff]
  %v33 = vld [vmem:[%s0 + $0x98] sm:$0xff]
  %v34 = vld [vmem:[%s0 + $0xa0] sm:$0xff]
  %v35 = vld [vmem:[%s0 + $0xa8] sm:$0xff]
  %v36 = vld [vmem:[%s0 + $0xb0] sm:$0xff]
  %v37 = vld [vmem:[%s0 + $0xb8] sm:$0xff]
  %v38 = vld [vmem:[%s0 + $0xc0] sm:$0xff]
  %v39 = vld [vmem:[%s0 + $0xc8] sm:$0xff]
  %v40 = vld [vmem:[%s0 + $0xd0] sm:$0xff]
  %v41 = vld [vmem:[%s1] sm:$0xff]
  %v42 = vld [vmem:[%s1 + $0x8] sm:$0xff]
  %v43 = vld [vmem:[%s1 + $0x10] sm:$0xff]
  %v44 = vld [vmem:[%s1 + $0x18] sm:$0xff]
  %v45 = vld [vmem:[%s1 + $0x20] sm:$0xff]
  %v46 = vld [vmem:[%s1 + $0x28] sm:$0xff]
  %v47 = vld [vmem:[%s1 + $0x30] sm:$0xff]
  %v48 = vld [vmem:[%s1 + $0x38] sm:$0xff]
  %v49 = vld [vmem:[%s1 + $0x40] sm:$0xff]
  %v50 = vld [vmem:[%s1 + $0x48] sm:$0xff]
  %v51 = vld [vmem:[%s1 + $0x50] sm:$0xff]
  %v52 = vld [vmem:[%s1 + $0x58] sm:$0xff]
  %v53 = vld [vmem:[%s1 + $0x60] sm:$0xff]
  %v54 = vld [vmem:[%s1 + $0x68] sm:$0xff]
  %v55 = vld [vmem:[%s1 + $0x70] sm:$0xff]
  %v56 = vld [vmem:[%s1 + $0x78] sm:$0xff]
  %v57 = vld [vmem:[%s1 + $0x80] sm:$0xff]
  %v58 = vld [vmem:[%s1 + $0x88] sm:$0xff]
  %v59 = vld [vmem:[%s1 + $0x90] sm:$0xff]
  %v60 = vld [vmem:[%s1 + $0x98] sm:$0xff]
  %v61 = vld [vmem:[%s1 + $0xa0] sm:$0xff]
  %v62 = vld [vmem:[%s1 + $0xa8] sm:$0xff]
  %v63 = vld [vmem:[%s1 + $0xb0] sm:$0xff]
  %v64 = vld [vmem:[%s1 + $0xb8] sm:$0xff]
  %v65 = vld [vmem:[%s1 + $0xc0] sm:$0xff]
  %v66 = vld [vmem:[%s1 + $0xc8] sm:$0xff]
  %v67 = vld [vmem:[%s1 + $0xd0] sm:$0xff]
  %v68 = vld [vmem:[%s1 + $0xd8] sm:$0xff]
  %v69 = vld [vmem:[%s1 + $0xe0] sm:$0xff]
  %v70 = vld [vmem:[%s1 + $0xe8] sm:$0xff]
  %v71 = vld [vmem:[%s1 + $0xf0] sm:$0xff]
  %v72 = vld [vmem:[%s1 + $0xf8] sm:$0xff]
  %v73 = vld [vmem:[%s1 + $0x100] sm:$0xff]
  %v74 = vld [vmem:[%s1 + $0x108] sm:$0xff]
  %v75 = vld [vmem:[%s1 + $0x110] sm:$0xff]
  %v76 = vld [vmem:[%s1 + $0x118] sm:$0xff]
  %v77 = vld [vmem:[%s1 + $0x120] sm:$0xff]
  %v78 = vld [vmem:[%s1 + $0x128] sm:$0xff]
  %v79 = vld [vmem:[%s1 + $0x130] sm:$0xff]
  %v80 = vld [vmem:[%s1 + $0x138] sm:$0xff]
  %v81 = vld [vmem:[%s1 + $0x140] sm:$0xff]
  %v82 = vld [vmem:[%s1 + $0x148] sm:$0xff]
  %v83 = vld [vmem:[%s1 + $0x150] sm:$0xff]
  %v84 = vld [vmem:[%s1 + $0x158] sm:$0xff]
  %v85 = vld [vmem:[%s1 + $0x160] sm:$0xff]
  %v86 = vld [vmem:[%s1 + $0x168] sm:$0xff]
  %v87 = vld [vmem:[%s1 + $0x170] sm:$0xff]
  %v88 = vld [vmem:[%s1 + $0x178] sm:$0xff]
  %v89 = vld [vmem:[%s2] sm:$0x1]
  %v91 = vlaneseq
  %v92 = vshrl.u32 %v91, 7
  %v93 = vsub.s32 0, %v92
  %v94 = vrot.slane %v89, %v93
  %96 = vmatprep.subr.mxu0 0.0
  %97 = vmatpush1.msra.mxu0 %v41
  %98 = vmatprep.subr.mxu0 0.0
  %99 = vmatpush1.msra.mxu0 %v42
  %100 = vmatprep.subr.mxu0 0.0
  %101 = vmatpush1.msra.mxu0 %v43
  %102 = vmatprep.subr.mxu0 0.0
  %103 = vmatpush1.msra.mxu0 %v44
  %104 = vmatprep.subr.mxu0 0.0
  %105 = vmatpush1.msra.mxu0 %v45
  %106 = vmatprep.subr.mxu0 0.0
  %107 = vmatpush1.msra.mxu0 %v46
  %108 = vmatprep.subr.mxu0 0.0
  %109 = vmatpush1.msra.mxu0 %v47
  %110 = vmatprep.subr.mxu0 0.0
  %111 = vmatpush1.msra.mxu0 %v48
  %112 = vmatprep.subr.mxu0 0.0
  %113 = vmatpush1.msra.mxu0 %v49
  %114 = vmatprep.subr.mxu0 0.0
  %115 = vmatpush1.msra.mxu0 %v50
  %116 = vmatprep.subr.mxu0 0.0
  %117 = vmatpush1.msra.mxu0 %v51
  %118 = vmatprep.subr.mxu0 0.0
  %119 = vmatpush1.msra.mxu0 %v52
  %120 = vmatprep.subr.mxu0 0.0
  %121 = vmatpush1.msra.mxu0 %v53
  %122 = vmatprep.subr.mxu0 0.0
  %123 = vmatpush1.msra.mxu0 %v54
  %124 = vmatprep.subr.mxu0 0.0
  %125 = vmatpush1.msra.mxu0 %v55
  %126 = vmatprep.subr.mxu0 0.0
  %127 = vmatpush1.msra.mxu0 %v56
  %128 = vmatprep.subr.mxu0 0.0
  %129 = vmatpush1.msra.mxu0 %v57
  %130 = vmatprep.subr.mxu0 0.0
  %131 = vmatpush1.msra.mxu0 %v58
  %132 = vmatprep.subr.mxu0 0.0
  %133 = vmatpush1.msra.mxu0 %v59
  %134 = vmatprep.subr.mxu0 0.0
  %135 = vmatpush1.msra.mxu0 %v60
  %136 = vmatprep.subr.mxu0 0.0
  %137 = vmatpush1.msra.mxu0 %v61
  %138 = vmatprep.subr.mxu0 0.0
  %139 = vmatpush1.msra.mxu0 %v62
  %140 = vmatprep.subr.mxu0 0.0
  %141 = vmatpush1.msra.mxu0 %v63
  %142 = vmatprep.subr.mxu0 0.0
  %143 = vmatpush1.msra.mxu0 %v64
  %144 = vmatprep.subr.mxu0 0.0
  %145 = vmatpush1.msra.mxu0 %v65
  %146 = vmatprep.subr.mxu0 0.0
  %147 = vmatpush1.msra.mxu0 %v66
  %148 = vmatprep.subr.mxu0 0.0
  %149 = vmatpush1.msra.mxu0 %v67
  %150 = vmatprep.subr.mxu0 0.0
  %151 = vmatpush1.msra.mxu0 %v68
  %152 = vmatprep.subr.mxu0 0.0
  %153 = vmatpush1.msra.mxu0 %v69
  %154 = vmatprep.subr.mxu0 0.0
  %155 = vmatpush1.msra.mxu0 %v70
  %156 = vmatprep.subr.mxu0 0.0
  %157 = vmatpush1.msra.mxu0 %v71
  %158 = vmatprep.subr.mxu0 0.0
  %159 = vmatpush1.msra.mxu0 %v72
  %160 = vmatprep.mubr.f32.mxu0 %v15
  %161 = vmatmul.mubr.f32.gmra.mrb[0].mxu0 %v14
  %v162 = vpop.f32.mrb[0].mxu0
  %v163 = vadd.f32 %v94, %v162
  %v164 = vpop.f32.mrb[0].mxu0
  %165 = vmatprep.mubr.f32.mxu0 %v18
  %166 = vmatmul.mubr.f32.gmra.mrb[0].mxu0 %v17
  %v167 = vpop.f32.mrb[0].mxu0
  %v168 = vadd.f32 %v94, %v167
  %v169 = vpop.f32.mrb[0].mxu0
  %170 = vmatprep.mubr.f32.mxu0 %v21
  %171 = vmatmul.mubr.f32.gmra.mrb[0].mxu0 %v20
  %v172 = vpop.f32.mrb[0].mxu0
  %v173 = vadd.f32 %v94, %v172
  %v174 = vpop.f32.mrb[0].mxu0
  %175 = vmatprep.mubr.f32.mxu0 %v24
  %176 = vmatmul.mubr.f32.gmra.mrb[0].mxu0 %v23
  %v177 = vpop.f32.mrb[0].mxu0
  %v178 = vadd.f32 %v94, %v177
  %v179 = vpop.f32.mrb[0].mxu0
  %180 = vmatprep.mubr.f32.mxu0 %v27
  %181 = vmatmul.mubr.f32.gmra.mrb[0].mxu0 %v26
  %v182 = vpop.f32.mrb[0].mxu0
  %v183 = vadd.f32 %v94, %v182
  %v184 = vpop.f32.mrb[0].mxu0
  %185 = vmatprep.mubr.f32.mxu0 %v30
  %186 = vmatmul.mubr.f32.gmra.mrb[0].mxu0 %v29
  %v187 = vpop.f32.mrb[0].mxu0
  %v188 = vadd.f32 %v94, %v187
  %v189 = vpop.f32.mrb[0].mxu0
  %190 = vmatprep.mubr.f32.mxu0 %v33
  %191 = vmatmul.mubr.f32.gmra.mrb[0].mxu0 %v32
  %v192 = vpop.f32.mrb[0].mxu0
  %v193 = vadd.f32 %v94, %v192
  %v194 = vpop.f32.mrb[0].mxu0
  %195 = vmatprep.mubr.f32.mxu0 %v36
  %196 = vmatmul.mubr.f32.gmra.mrb[0].mxu0 %v35
  %v197 = vpop.f32.mrb[0].mxu0
  %v198 = vadd.f32 %v94, %v197
  %v199 = vpop.f32.mrb[0].mxu0
  %200 = vmatprep.mubr.f32.mxu0 %v39
  %201 = vmatmul.mubr.f32.gmra.mrb[0].mxu0 %v38
  %v202 = vpop.f32.mrb[0].mxu0
  %v203 = vadd.f32 %v94, %v202
  %v204 = vpop.f32.mrb[0].mxu0
  %205 = vdwg.mxu0
  %206 = vmatprep.subr.mxu0 0.0
  %207 = vmatpush1.msra.mxu0 %v73
  %208 = vmatprep.subr.mxu0 0.0
  %209 = vmatpush1.msra.mxu0 %v74
  %210 = vmatprep.subr.mxu0 0.0
  %211 = vmatpush1.msra.mxu0 %v75
  %212 = vmatprep.subr.mxu0 0.0
  %213 = vmatpush1.msra.mxu0 %v76
  %214 = vmatprep.subr.mxu0 0.0
  %215 = vmatpush1.msra.mxu0 %v77
  %216 = vmatprep.subr.mxu0 0.0
  %217 = vmatpush1.msra.mxu0 %v78
  %218 = vmatprep.subr.mxu0 0.0
  %219 = vmatpush1.msra.mxu0 %v79
  %220 = vmatprep.subr.mxu0 0.0
  %221 = vmatpush1.msra.mxu0 %v80
  %222 = vmatprep.subr.mxu0 0.0
  %223 = vmatpush1.msra.mxu0 %v81
  %224 = vmatprep.subr.mxu0 0.0
  %225 = vmatpush1.msra.mxu0 %v82
  %226 = vmatprep.subr.mxu0 0.0
  %227 = vmatpush1.msra.mxu0 %v83
  %228 = vmatprep.subr.mxu0 0.0
  %229 = vmatpush1.msra.mxu0 %v84
  %230 = vmatprep.subr.mxu0 0.0
  %231 = vmatpush1.msra.mxu0 %v85
  %232 = vmatprep.subr.mxu0 0.0
  %233 = vmatpush1.msra.mxu0 %v86
  %234 = vmatprep.subr.mxu0 0.0
  %235 = vmatpush1.msra.mxu0 %v87
  %236 = vmatprep.subr.mxu0 0.0
  %237 = vmatpush1.msra.mxu0 %v88
  %238 = vmatprep.subr.mxu0 0.0
  %239 = vmatpush1.msra.mxu0 0.0
  %240 = vmatprep.subr.mxu0 0.0
  %241 = vmatpush1.msra.mxu0 0.0
  %242 = vmatprep.subr.mxu0 0.0
  %243 = vmatpush1.msra.mxu0 0.0
  %244 = vmatprep.subr.mxu0 0.0
  %245 = vmatpush1.msra.mxu0 0.0
  %246 = vmatprep.subr.mxu0 0.0
  %247 = vmatpush1.msra.mxu0 0.0
  %248 = vmatprep.subr.mxu0 0.0
  %249 = vmatpush1.msra.mxu0 0.0
  %250 = vmatprep.subr.mxu0 0.0
  %251 = vmatpush1.msra.mxu0 0.0
  %252 = vmatprep.subr.mxu0 0.0
  %253 = vmatpush1.msra.mxu0 0.0
  %254 = vmatprep.subr.mxu0 0.0
  %255 = vmatpush1.msra.mxu0 0.0
  %256 = vmatprep.subr.mxu0 0.0
  %257 = vmatpush1.msra.mxu0 0.0
  %258 = vmatprep.subr.mxu0 0.0
  %259 = vmatpush1.msra.mxu0 0.0
  %260 = vmatprep.subr.mxu0 0.0
  %261 = vmatpush1.msra.mxu0 0.0
  %262 = vmatprep.subr.mxu0 0.0
  %263 = vmatpush1.msra.mxu0 0.0
  %264 = vmatprep.subr.mxu0 0.0
  %265 = vmatpush1.msra.mxu0 0.0
  %266 = vmatprep.subr.mxu0 0.0
  %267 = vmatpush1.msra.mxu0 0.0
  %268 = vmatprep.subr.mxu0 0.0
  %269 = vmatpush1.msra.mxu0 0.0
  %270 = vmatprep.mubr.f32.mxu0 0.0
  %271 = vmatmul.mubr.f32.gmra.mrb[0].mxu0 %v16
  %v272 = vpop.f32.mrb[0].mxu0
  %v273 = vadd.f32 %v163, %v272
  %v274 = vpop.f32.mrb[0].mxu0
  %275 = vmatprep.mubr.f32.mxu0 0.0
  %276 = vmatmul.mubr.f32.gmra.mrb[0].mxu0 %v19
  %v277 = vpop.f32.mrb[0].mxu0
  %v278 = vadd.f32 %v168, %v277
  %v279 = vpop.f32.mrb[0].mxu0
  %280 = vmatprep.mubr.f32.mxu0 0.0
  %281 = vmatmul.mubr.f32.gmra.mrb[0].mxu0 %v22
  %v282 = vpop.f32.mrb[0].mxu0
  %v283 = vadd.f32 %v173, %v282
  %v284 = vpop.f32.mrb[0].mxu0
  %285 = vmatprep.mubr.f32.mxu0 0.0
  %286 = vmatmul.mubr.f32.gmra.mrb[0].mxu0 %v25
  %v287 = vpop.f32.mrb[0].mxu0
  %v288 = vadd.f32 %v178, %v287
  %v289 = vpop.f32.mrb[0].mxu0
  %290 = vmatprep.mubr.f32.mxu0 0.0
  %291 = vmatmul.mubr.f32.gmra.mrb[0].mxu0 %v28
  %v292 = vpop.f32.mrb[0].mxu0
  %v293 = vadd.f32 %v183, %v292
  %v294 = vpop.f32.mrb[0].mxu0
  %295 = vmatprep.mubr.f32.mxu0 0.0
  %296 = vmatmul.mubr.f32.gmra.mrb[0].mxu0 %v31
  %v297 = vpop.f32.mrb[0].mxu0
  %v298 = vadd.f32 %v188, %v297
  %v299 = vpop.f32.mrb[0].mxu0
  %300 = vmatprep.mubr.f32.mxu0 0.0
  %301 = vmatmul.mubr.f32.gmra.mrb[0].mxu0 %v34
  %v302 = vpop.f32.mrb[0].mxu0
  %v303 = vadd.f32 %v193, %v302
  %v304 = vpop.f32.mrb[0].mxu0
  %305 = vmatprep.mubr.f32.mxu0 0.0
  %306 = vmatmul.mubr.f32.gmra.mrb[0].mxu0 %v37
  %v307 = vpop.f32.mrb[0].mxu0
  %v308 = vadd.f32 %v198, %v307
  %v309 = vpop.f32.mrb[0].mxu0
  %310 = vmatprep.mubr.f32.mxu0 0.0
  %311 = vmatmul.mubr.f32.gmra.mrb[0].mxu0 %v40
  %v312 = vpop.f32.mrb[0].mxu0
  %v313 = vadd.f32 %v203, %v312
  %v314 = vpop.f32.mrb[0].mxu0
  %315 = vdwg.mxu0
  %v316 = vmax.f32 %v273, 0.0
  %v317 = vmax.f32 %v278, 0.0
  %v318 = vmax.f32 %v283, 0.0
  %v319 = vmax.f32 %v288, 0.0
  %v320 = vmax.f32 %v293, 0.0
  %v321 = vmax.f32 %v298, 0.0
  %v322 = vmax.f32 %v303, 0.0
  %v323 = vmax.f32 %v308, 0.0
  %v324 = vmax.f32 %v313, 0.0
  %325 = vst [vmem:[%s3] sm:$0xff] %v316
  %326 = vst [vmem:[%s3 + $0x8] sm:$0xff] %v317
  %327 = vst [vmem:[%s3 + $0x10] sm:$0xff] %v318
  %328 = vst [vmem:[%s3 + $0x18] sm:$0xff] %v319
  %329 = vst [vmem:[%s3 + $0x20] sm:$0xff] %v320
  %330 = vst [vmem:[%s3 + $0x28] sm:$0xff] %v321
  %331 = vst [vmem:[%s3 + $0x30] sm:$0xff] %v322
  %332 = vst [vmem:[%s3 + $0x38] sm:$0xff] %v323
  %333 = vst [vmem:[%s3 + $0x40] sm:$0xff] %v324
  // Predicated region
  $region14: #{style_encoder_forward.3} parent=0 // pred_check
    _
  $region15: #{style_encoder_forward.3} parent=0 // pred_check_branch
    %335 = sbr.rel (0) target = $region17
  $region16: #{style_encoder_forward.3} parent=0 // pred_region
    _
  $region17: #{style_encoder_forward.3} parent=0 // pred_fallthru
    _
  // Predicated region
  $region18: #{style_encoder_forward.3} parent=0 // pred_check
    _
  $region19: #{style_encoder_forward.3} parent=0 // pred_check_branch
    %337 = sbr.rel (0) target = $region21
  $region20: #{style_encoder_forward.3} parent=0 // pred_region
    _
  $region21: #{style_encoder_forward.3} parent=0 // pred_fallthru
    _

// kernel: style_encoder_forward.5
$region0: #{style_encoder_forward.5}
  #allocation0 [shape = 'u32[]', space=smem, size = 0x4, offset = 0x4, fixed_abs, tag = 'smem constant byte address 0x4 - core index']
  #allocation1 [shape = 'u32[144,128]{1,0:T(1,128)}', space=vmem, size = 0x12000, scoped, tag = 'internal scratch']
  #allocation2 [shape = 'f32[1,128]{1,0:T(1,128)}', space=vmem, size = 0x200, scoped, tag = 'scratch operand']
  %s0 = inlined_call_operand.vmem [shape: f32[2,4,640], index: 0, kind: input, shape index: {}]
  %s1 = inlined_call_operand.vmem [shape: f32[640,128], index: 1, kind: input, shape index: {}]
  %s2 = inlined_call_operand.vmem [shape: f32[1,128], index: 2, kind: input, shape index: {}]
  %s3 = inlined_call_operand.hbm [shape: f32[2,1,128], index: 3, kind: output, shape index: {}]
  %s4 = sld [smem:[#allocation0]]
  $region53: #{style_encoder_forward.5} parent=0
    _
  %s6 = ssub.s32 1, %s4
  %s7 = scalar_select 0, %s6, %s4
  $region1: #{style_encoder_forward.5} parent=0
    #allocation3 [shape = 'u8[1024]{0}', space=vmem, size = 0x400, scoped, tag = 'output window, operand 0']
    #allocation4 [shape = 's32[2]{0}', space=sflag, size = 0x8, scoped, tag = 'scoped memory for style_encoder_forward.5']
    %8 = vsyncpa [#allocation4], 0
    %s9 = scalar_lea.sflag [#allocation4], 1
    %10 = vsyncpa %s9, 0
    loop: start=0, step=1, limit=4
    $region2: #{style_encoder_forward.5} parent=1 // loop_pre_header
      _
    $region3: #{style_encoder_forward.5} parent=1 // loop_header
      %s12 = sphi 0, %s16
      %p13 = scmp.ge.s32.totalorder %s12, 4
      %s19 = sphi 0, %s31
      %s20 = sphi 0, %s27
      %s21 = sphi 0, %s19
      %s22 = sphi 0, %s20
      %s23 = sphi 0, %s21
      %s24 = sphi 0, %s22
      %s36 = sphi 0, %s38
      %s39 = sphi 0, %s36
      %s40 = sphi 0, %s39
      %s56 = sphi 0, %s40
      %s60 = sphi 0, %s60
      %s62 = sphi 0, %s60
      %s63 = sphi 0, %s62
      %s77 = sphi 0, %s63
      %s81 = sphi 0, %s81
      %s83 = sphi 0, %s81
      %s84 = sphi 0, %s83
      %s98 = sphi 0, %s84
      %s104 = sphi 0, %s106
      %s107 = sphi 0, %s104
      %s108 = sphi 0, %s107
      %s124 = sphi 0, %s108
    $region4: #{style_encoder_forward.5} parent=1 // loop_header_branch
      %15 = sbr.rel (%p13) target = $region8
    $region5: #{style_encoder_forward.5} parent=1 // loop_body
      %s17 = ssub.s32 %s12, 1
      %s18 = ssub.s32 %s12, 2
      %s25 = sadd.s32 1, %s20
      %p26 = scmp.ge.s32.totalorder %s25, 1
      %s27 = scalar_select %p26, 0, %s25
      %s28 = sadd.s32 1, %s19
      %s29 = scalar_select %p26, %s28, %s19
      %p30 = scmp.ge.s32.totalorder %s29, 2
      %s31 = scalar_select %p30, 0, %s29
      %s32 = ssub.s32 %s19, %s31
      %s33 = ssub.s32 %s20, %s27
      %s34 = sor.u32 %s32, %s33
      %p35 = scmp.eq.s32.totalorder %s34, 0
      %s37 = sadd.s32 %s36, 1
      %s38 = scalar_select %p35, %s36, %s37
      %p41 = pneg %p35
      %p42 = scmp.eq.s32.totalorder %s12, 1
      %p43 = por %p41, %p42
      %p44 = scmp.ne.s32.totalorder %s36, %s39
      %p45 = scmp.eq.s32.totalorder %s12, 0
      %p46 = por %p44, %p45
      %p47 = scmp.ne.s32.totalorder %s36, %s39
      %p48 = scmp.eq.s32.totalorder %s17, 1
      %p49 = por %p47, %p48
      %p50 = scmp.ne.s32.totalorder %s39, %s40
      %p51 = scmp.eq.s32.totalorder %s17, 0
      %p52 = por %p50, %p51
      %p53 = scmp.ne.s32.totalorder %s39, %s40
      %p54 = scmp.eq.s32.totalorder %s18, 1
      %p55 = por %p53, %p54
      %p57 = scmp.ne.s32.totalorder %s40, %s56
      %p58 = scmp.eq.s32.totalorder %s18, 0
      %p59 = por %p57, %p58
      %s61 = sadd.s32 %s60, 1
      %p64 = scmp.eq.s32.totalorder %s12, 1
      %p65 = scmp.ne.s32.totalorder %s60, %s62
      %p66 = scmp.eq.s32.totalorder %s12, 0
      %p67 = por %p65, %p66
      %p68 = scmp.ne.s32.totalorder %s60, %s62
      %p69 = scmp.eq.s32.totalorder %s17, 1
      %p70 = por %p68, %p69
      %p71 = scmp.ne.s32.totalorder %s62, %s63
      %p72 = scmp.eq.s32.totalorder %s17, 0
      %p73 = por %p71, %p72
      %p74 = scmp.ne.s32.totalorder %s62, %s63
      %p75 = scmp.eq.s32.totalorder %s18, 1
      %p76 = por %p74, %p75
      %p78 = scmp.ne.s32.totalorder %s63, %s77
      %p79 = scmp.eq.s32.totalorder %s18, 0
      %p80 = por %p78, %p79
      %s82 = sadd.s32 %s81, 1
      %p85 = scmp.eq.s32.totalorder %s12, 1
      %p86 = scmp.ne.s32.totalorder %s81, %s83
      %p87 = scmp.eq.s32.totalorder %s12, 0
      %p88 = por %p86, %p87
      %p89 = scmp.ne.s32.totalorder %s81, %s83
      %p90 = scmp.eq.s32.totalorder %s17, 1
      %p91 = por %p89, %p90
      %p92 = scmp.ne.s32.totalorder %s83, %s84
      %p93 = scmp.eq.s32.totalorder %s17, 0
      %p94 = por %p92, %p93
      %p95 = scmp.ne.s32.totalorder %s83, %s84
      %p96 = scmp.eq.s32.totalorder %s18, 1
      %p97 = por %p95, %p96
      %p99 = scmp.ne.s32.totalorder %s84, %s98
      %p100 = scmp.eq.s32.totalorder %s18, 0
      %p101 = por %p99, %p100
      %s102 = ssub.s32 %s19, %s31
      %p103 = scmp.eq.s32.totalorder %s102, 0
      %s105 = sadd.s32 %s104, 1
      %s106 = scalar_select %p103, %s104, %s105
      %p109 = pneg %p103
      %p110 = scmp.eq.s32.totalorder %s12, 1
      %p111 = por %p109, %p110
      %p112 = scmp.ne.s32.totalorder %s104, %s107
      %p113 = scmp.eq.s32.totalorder %s12, 0
      %p114 = por %p112, %p113
      %p115 = scmp.ne.s32.totalorder %s104, %s107
      %p116 = scmp.eq.s32.totalorder %s17, 1
      %p117 = por %p115, %p116
      %p118 = scmp.ne.s32.totalorder %s107, %s108
      %p119 = scmp.eq.s32.totalorder %s17, 0
      %p120 = por %p118, %p119
      %p121 = scmp.ne.s32.totalorder %s107, %s108
      %p122 = scmp.eq.s32.totalorder %s18, 1
      %p123 = por %p121, %p122
      %p125 = scmp.ne.s32.totalorder %s108, %s124
      %p126 = scmp.eq.s32.totalorder %s18, 0
      %p127 = por %p125, %p126
      %p128 = scmp.le.s32.totalorder 1, %s12
      %p129 = scmp.lt.s32.totalorder %s12, 3
      %p130 = pnand %p128, %p129
      %p131 = pneg %p130
      // Predicated region
      $region9: #{style_encoder_forward.5} parent=5 // pred_check
        _
      $region10: #{style_encoder_forward.5} parent=5 // pred_check_branch
        %133 = sbr.rel (%p130) target = $region12
      $region11: #{style_encoder_forward.5} parent=5 // pred_region
        %s134 = ssub.s32 %s12, 1
        // Predicated region
        $region13: #{style_encoder_forward.5} parent=11 // pred_check
          %p135 = pneg %p73
        $region14: #{style_encoder_forward.5} parent=11 // pred_check_branch
          %137 = sbr.rel (%p135) target = $region16
        $region15: #{style_encoder_forward.5} parent=11 // pred_region
          _
        $region16: #{style_encoder_forward.5} parent=11 // pred_fallthru
          _
        // Predicated region
        $region17: #{style_encoder_forward.5} parent=11 // pred_check
          %p138 = pneg %p94
        $region18: #{style_encoder_forward.5} parent=11 // pred_check_branch
          %140 = sbr.rel (%p138) target = $region20
        $region19: #{style_encoder_forward.5} parent=11 // pred_region
          _
        $region20: #{style_encoder_forward.5} parent=11 // pred_fallthru
          _
      $region12: #{style_encoder_forward.5} parent=5 // pred_fallthru
        _
      %p141 = scmp.lt.s32.totalorder %s12, 2
      // Predicated region
      $region21: #{style_encoder_forward.5} parent=5 // pred_check
        %p142 = pneg %p141
      $region22: #{style_encoder_forward.5} parent=5 // pred_check_branch
        %144 = sbr.rel (%p142) target = $region24
      $region23: #{style_encoder_forward.5} parent=5 // pred_region
        // Predicated region
        $region25: #{style_encoder_forward.5} parent=23 // pred_check
          %p145 = pneg %p46
        $region26: #{style_encoder_forward.5} parent=23 // pred_check_branch
          %147 = sbr.rel (%p145) target = $region28
        $region27: #{style_encoder_forward.5} parent=23 // pred_region
          %p148 = scmp.lt.s32.totalorder %s19, 1
          %s149 = scalar_select %p148, %s19, 1
          %p150 = scmp.lt.s32.totalorder %s20, 0
          %s151 = scalar_select %p150, %s20, 0
          %s152 = smul.addr %s151, 5
          %s153 = smul.addr %s149, 5
          %s154 = sadd.s32 %s152, %s153
          %s155 = smul.addr %s154, 4
          %s156 = scalar_lea.vmem %s0, %s155
        $region28: #{style_encoder_forward.5} parent=23 // pred_fallthru
          _
      $region24: #{style_encoder_forward.5} parent=5 // pred_fallthru
        _
      %p157 = scmp.le.s32.totalorder 1, %s12
      %p158 = scmp.lt.s32.totalorder %s12, 3
      %p159 = pnand %p157, %p158
      %p160 = pneg %p159
      // Predicated region
      $region29: #{style_encoder_forward.5} parent=5 // pred_check
        _
      $region30: #{style_encoder_forward.5} parent=5 // pred_check_branch
        %162 = sbr.rel (%p159) target = $region32
      $region31: #{style_encoder_forward.5} parent=5 // pred_region
        %s163 = ssub.s32 %s12, 1
        %p164 = scmp.lt.s32.totalorder %s21, 1
        %s165 = scalar_select %p164, %s21, 1
        %p166 = scmp.lt.s32.totalorder %s22, 0
        %s167 = scalar_select %p166, %s22, 0
        %s168 = smul.addr %s167, 5
        %s169 = smul.addr %s165, 5
        %s170 = sadd.s32 %s168, %s169
        %s171 = smul.addr %s170, 4
        %s172 = scalar_lea.vmem %s0, %s171
        %p173 = pneg %p52
        %p174 = pneg %p49
        %p175 = pneg %p73
        %p176 = pneg %p70
        %p177 = pneg %p94
        %p178 = pneg %p91
        %p179 = pneg %p120
        %p180 = pneg %p117
        %s181 = sand.u32 %s107, 1
        %s182 = scalar_lea.sflag [#allocation4], %s181
        %s183 = sand.u32 %s107, 1
        %s184 = scalar_lea.vmem [#allocation3], %s183
        %p185 = scmp.lt.s32.totalorder %s21, 1
        %s186 = scalar_select %p185, %s21, 1
        %p187 = scmp.lt.s32.totalorder %s22, 0
        %s188 = scalar_select %p187, %s22, 0
        %s189 = smul.addr %s188, 5
        %s190 = smul.addr %s186, 5
        %s191 = sadd.s32 %s189, %s190
        %s192 = smul.addr %s191, 4
        %s193 = scalar_lea.vmem %s0, %s192
        %p194 = scmp.eq.s32.totalorder %s22, 0
        // Predicated region
        $region33: #{style_encoder_forward.5} parent=31 // pred_check
          %p195 = pneg %p194
        $region34: #{style_encoder_forward.5} parent=31 // pred_check_branch
          %197 = sbr.rel (%p195) target = $region36
        $region35: #{style_encoder_forward.5} parent=31 // pred_region
          %198 = vst [vmem:[#allocation2] sm:$0x1] 0.0
        $region36: #{style_encoder_forward.5} parent=31 // pred_fallthru
          _
        %v199 = vld [vmem:[%s193] sm:$0xff]
        %v200 = vld [vmem:[%s193 + $0x8] sm:$0xff]
        %v201 = vld [vmem:[%s193 + $0x10] sm:$0xf]
        %v202 = vld [vmem:[%s1] sm:$0xff]
        %v203 = vld [vmem:[%s1 + $0x8] sm:$0xff]
        %v204 = vld [vmem:[%s1 + $0x10] sm:$0xff]
        %v205 = vld [vmem:[%s1 + $0x18] sm:$0xff]
        %v206 = vld [vmem:[%s1 + $0x20] sm:$0xff]
        %v207 = vld [vmem:[%s1 + $0x28] sm:$0xff]
        %v208 = vld [vmem:[%s1 + $0x30] sm:$0xff]
        %v209 = vld [vmem:[%s1 + $0x38] sm:$0xff]
        %v210 = vld [vmem:[%s1 + $0x40] sm:$0xff]
        %v211 = vld [vmem:[%s1 + $0x48] sm:$0xff]
        %v212 = vld [vmem:[%s1 + $0x50] sm:$0xff]
        %v213 = vld [vmem:[%s1 + $0x58] sm:$0xff]
        %v214 = vld [vmem:[%s1 + $0x60] sm:$0xff]
        %v215 = vld [vmem:[%s1 + $0x68] sm:$0xff]
        %v216 = vld [vmem:[%s1 + $0x70] sm:$0xff]
        %v217 = vld [vmem:[%s1 + $0x78] sm:$0xff]
        %v218 = vld [vmem:[%s1 + $0x80] sm:$0xff]
        %v219 = vld [vmem:[%s1 + $0x88] sm:$0xff]
        %v220 = vld [vmem:[%s1 + $0x90] sm:$0xff]
        %v221 = vld [vmem:[%s1 + $0x98] sm:$0xff]
        %v222 = vld [vmem:[%s1 + $0xa0] sm:$0xff]
        %v223 = vld [vmem:[%s1 + $0xa8] sm:$0xff]
        %v224 = vld [vmem:[%s1 + $0xb0] sm:$0xff]
        %v225 = vld [vmem:[%s1 + $0xb8] sm:$0xff]
        %v226 = vld [vmem:[%s1 + $0xc0] sm:$0xff]
        %v227 = vld [vmem:[%s1 + $0xc8] sm:$0xff]
        %v228 = vld [vmem:[%s1 + $0xd0] sm:$0xff]
        %v229 = vld [vmem:[%s1 + $0xd8] sm:$0xff]
        %v230 = vld [vmem:[%s1 + $0xe0] sm:$0xff]
        %v231 = vld [vmem:[%s1 + $0xe8] sm:$0xff]
        %v232 = vld [vmem:[%s1 + $0xf0] sm:$0xff]
        %v233 = vld [vmem:[%s1 + $0xf8] sm:$0xff]
        %v234 = vld [vmem:[%s1 + $0x100] sm:$0xff]
        %v235 = vld [vmem:[%s1 + $0x108] sm:$0xff]
        %v236 = vld [vmem:[%s1 + $0x110] sm:$0xff]
        %v237 = vld [vmem:[%s1 + $0x118] sm:$0xff]
        %v238 = vld [vmem:[%s1 + $0x120] sm:$0xff]
        %v239 = vld [vmem:[%s1 + $0x128] sm:$0xff]
        %v240 = vld [vmem:[%s1 + $0x130] sm:$0xff]
        %v241 = vld [vmem:[%s1 + $0x138] sm:$0xff]
        %v242 = vld [vmem:[%s1 + $0x140] sm:$0xff]
        %v243 = vld [vmem:[%s1 + $0x148] sm:$0xff]
        %v244 = vld [vmem:[%s1 + $0x150] sm:$0xff]
        %v245 = vld [vmem:[%s1 + $0x158] sm:$0xff]
        %v246 = vld [vmem:[%s1 + $0x160] sm:$0xff]
        %v247 = vld [vmem:[%s1 + $0x168] sm:$0xff]
        %v248 = vld [vmem:[%s1 + $0x170] sm:$0xff]
        %v249 = vld [vmem:[%s1 + $0x178] sm:$0xff]
        %v250 = vld [vmem:[%s1 + $0x180] sm:$0xff]
        %v251 = vld [vmem:[%s1 + $0x188] sm:$0xff]
        %v252 = vld [vmem:[%s1 + $0x190] sm:$0xff]
        %v253 = vld [vmem:[%s1 + $0x198] sm:$0xff]
        %v254 = vld [vmem:[%s1 + $0x1a0] sm:$0xff]
        %v255 = vld [vmem:[%s1 + $0x1a8] sm:$0xff]
        %v256 = vld [vmem:[%s1 + $0x1b0] sm:$0xff]
        %v257 = vld [vmem:[%s1 + $0x1b8] sm:$0xff]
        %v258 = vld [vmem:[%s1 + $0x1c0] sm:$0xff]
        %v259 = vld [vmem:[%s1 + $0x1c8] sm:$0xff]
        %v260 = vld [vmem:[%s1 + $0x1d0] sm:$0xff]
        %v261 = vld [vmem:[%s1 + $0x1d8] sm:$0xff]
        %v262 = vld [vmem:[%s1 + $0x1e0] sm:$0xff]
        %v263 = vld [vmem:[%s1 + $0x1e8] sm:$0xff]
        %v264 = vld [vmem:[%s1 + $0x1f0] sm:$0xff]
        %v265 = vld [vmem:[%s1 + $0x1f8] sm:$0xff]
        %v266 = vld [vmem:[%s1 + $0x200] sm:$0xff]
        %v267 = vld [vmem:[%s1 + $0x208] sm:$0xff]
        %v268 = vld [vmem:[%s1 + $0x210] sm:$0xff]
        %v269 = vld [vmem:[%s1 + $0x218] sm:$0xff]
        %v270 = vld [vmem:[%s1 + $0x220] sm:$0xff]
        %v271 = vld [vmem:[%s1 + $0x228] sm:$0xff]
        %v272 = vld [vmem:[%s1 + $0x230] sm:$0xff]
        %v273 = vld [vmem:[%s1 + $0x238] sm:$0xff]
        %v274 = vld [vmem:[%s1 + $0x240] sm:$0xff]
        %v275 = vld [vmem:[%s1 + $0x248] sm:$0xff]
        %v276 = vld [vmem:[%s1 + $0x250] sm:$0xff]
        %v277 = vld [vmem:[%s1 + $0x258] sm:$0xff]
        %v278 = vld [vmem:[%s1 + $0x260] sm:$0xff]
        %v279 = vld [vmem:[%s1 + $0x268] sm:$0xff]
        %v280 = vld [vmem:[%s1 + $0x270] sm:$0xff]
        %v281 = vld [vmem:[%s1 + $0x278] sm:$0xff]
        %v282 = vld [vmem:[%s2] sm:$0x1]
        %v284 = vlaneseq
        %v285 = vshrl.u32 %v284, 7
        %v286 = vsub.s32 0, %v285
        %v287 = vrot.slane %v282, %v286
        %v291 = vcombine.high %v199, %v199
        %v292 = vcombine.high %v200, %v200
        %295 = vmatprep.subr.mxu0 0.0
        %296 = vmatpush1.msra.mxu0 %v202
        %297 = vmatprep.subr.mxu0 0.0
        %298 = vmatpush1.msra.mxu0 %v203
        %299 = vmatprep.subr.mxu0 0.0
        %300 = vmatpush1.msra.mxu0 %v204
        %301 = vmatprep.subr.mxu0 0.0
        %302 = vmatpush1.msra.mxu0 %v205
        %303 = vmatprep.subr.mxu0 0.0
        %304 = vmatpush1.msra.mxu0 %v206
        %305 = vmatprep.subr.mxu0 0.0
        %306 = vmatpush1.msra.mxu0 %v207
        %307 = vmatprep.subr.mxu0 0.0
        %308 = vmatpush1.msra.mxu0 %v208
        %309 = vmatprep.subr.mxu0 0.0
        %310 = vmatpush1.msra.mxu0 %v209
        %311 = vmatprep.subr.mxu0 0.0
        %312 = vmatpush1.msra.mxu0 %v210
        %313 = vmatprep.subr.mxu0 0.0
        %314 = vmatpush1.msra.mxu0 %v211
        %315 = vmatprep.subr.mxu0 0.0
        %316 = vmatpush1.msra.mxu0 %v212
        %317 = vmatprep.subr.mxu0 0.0
        %318 = vmatpush1.msra.mxu0 %v213
        %319 = vmatprep.subr.mxu0 0.0
        %320 = vmatpush1.msra.mxu0 %v214
        %321 = vmatprep.subr.mxu0 0.0
        %322 = vmatpush1.msra.mxu0 %v215
        %323 = vmatprep.subr.mxu0 0.0
        %324 = vmatpush1.msra.mxu0 %v216
        %325 = vmatprep.subr.mxu0 0.0
        %326 = vmatpush1.msra.mxu0 %v217
        %327 = vmatprep.subr.mxu0 0.0
        %328 = vmatpush1.msra.mxu0 %v218
        %329 = vmatprep.subr.mxu0 0.0
        %330 = vmatpush1.msra.mxu0 %v219
        %331 = vmatprep.subr.mxu0 0.0
        %332 = vmatpush1.msra.mxu0 %v220
        %333 = vmatprep.subr.mxu0 0.0
        %334 = vmatpush1.msra.mxu0 %v221
        %335 = vmatprep.subr.mxu0 0.0
        %336 = vmatpush1.msra.mxu0 %v222
        %337 = vmatprep.subr.mxu0 0.0
        %338 = vmatpush1.msra.mxu0 %v223
        %339 = vmatprep.subr.mxu0 0.0
        %340 = vmatpush1.msra.mxu0 %v224
        %341 = vmatprep.subr.mxu0 0.0
        %342 = vmatpush1.msra.mxu0 %v225
        %343 = vmatprep.subr.mxu0 0.0
        %344 = vmatpush1.msra.mxu0 %v226
        %345 = vmatprep.subr.mxu0 0.0
        %346 = vmatpush1.msra.mxu0 %v227
        %347 = vmatprep.subr.mxu0 0.0
        %348 = vmatpush1.msra.mxu0 %v228
        %349 = vmatprep.subr.mxu0 0.0
        %350 = vmatpush1.msra.mxu0 %v229
        %351 = vmatprep.subr.mxu0 0.0
        %352 = vmatpush1.msra.mxu0 %v230
        %353 = vmatprep.subr.mxu0 0.0
        %354 = vmatpush1.msra.mxu0 %v231
        %355 = vmatprep.subr.mxu0 0.0
        %356 = vmatpush1.msra.mxu0 %v232
        %357 = vmatprep.subr.mxu0 0.0
        %358 = vmatpush1.msra.mxu0 %v233
        %359 = vmatprep.mubr.f32.mxu0 %v291
        %360 = vmatmul.mubr.f32.gmra.mrb[0].mxu0 %v199
        %v361 = vpop.f32.mrb[0].mxu0
        %v362 = vadd.f32 %v287, %v361
        %v363 = vpop.f32.mrb[0].mxu0
        %364 = vdwg.mxu0
        %365 = vmatprep.subr.mxu0 0.0
        %366 = vmatpush1.msra.mxu0 %v234
        %367 = vmatprep.subr.mxu0 0.0
        %368 = vmatpush1.msra.mxu0 %v235
        %369 = vmatprep.subr.mxu0 0.0
        %370 = vmatpush1.msra.mxu0 %v236
        %371 = vmatprep.subr.mxu0 0.0
        %372 = vmatpush1.msra.mxu0 %v237
        %373 = vmatprep.subr.mxu0 0.0
        %374 = vmatpush1.msra.mxu0 %v238
        %375 = vmatprep.subr.mxu0 0.0
        %376 = vmatpush1.msra.mxu0 %v239
        %377 = vmatprep.subr.mxu0 0.0
        %378 = vmatpush1.msra.mxu0 %v240
        %379 = vmatprep.subr.mxu0 0.0
        %380 = vmatpush1.msra.mxu0 %v241
        %381 = vmatprep.subr.mxu0 0.0
        %382 = vmatpush1.msra.mxu0 %v242
        %383 = vmatprep.subr.mxu0 0.0
        %384 = vmatpush1.msra.mxu0 %v243
        %385 = vmatprep.subr.mxu0 0.0
        %386 = vmatpush1.msra.mxu0 %v244
        %387 = vmatprep.subr.mxu0 0.0
        %388 = vmatpush1.msra.mxu0 %v245
        %389 = vmatprep.subr.mxu0 0.0
        %390 = vmatpush1.msra.mxu0 %v246
        %391 = vmatprep.subr.mxu0 0.0
        %392 = vmatpush1.msra.mxu0 %v247
        %393 = vmatprep.subr.mxu0 0.0
        %394 = vmatpush1.msra.mxu0 %v248
        %395 = vmatprep.subr.mxu0 0.0
        %396 = vmatpush1.msra.mxu0 %v249
        %397 = vmatprep.subr.mxu0 0.0
        %398 = vmatpush1.msra.mxu0 %v250
        %399 = vmatprep.subr.mxu0 0.0
        %400 = vmatpush1.msra.mxu0 %v251
        %401 = vmatprep.subr.mxu0 0.0
        %402 = vmatpush1.msra.mxu0 %v252
        %403 = vmatprep.subr.mxu0 0.0
        %404 = vmatpush1.msra.mxu0 %v253
        %405 = vmatprep.subr.mxu0 0.0
        %406 = vmatpush1.msra.mxu0 %v254
        %407 = vmatprep.subr.mxu0 0.0
        %408 = vmatpush1.msra.mxu0 %v255
        %409 = vmatprep.subr.mxu0 0.0
        %410 = vmatpush1.msra.mxu0 %v256
        %411 = vmatprep.subr.mxu0 0.0
        %412 = vmatpush1.msra.mxu0 %v257
        %413 = vmatprep.subr.mxu0 0.0
        %414 = vmatpush1.msra.mxu0 %v258
        %415 = vmatprep.subr.mxu0 0.0
        %416 = vmatpush1.msra.mxu0 %v259
        %417 = vmatprep.subr.mxu0 0.0
        %418 = vmatpush1.msra.mxu0 %v260
        %419 = vmatprep.subr.mxu0 0.0
        %420 = vmatpush1.msra.mxu0 %v261
        %421 = vmatprep.subr.mxu0 0.0
        %422 = vmatpush1.msra.mxu0 %v262
        %423 = vmatprep.subr.mxu0 0.0
        %424 = vmatpush1.msra.mxu0 %v263
        %425 = vmatprep.subr.mxu0 0.0
        %426 = vmatpush1.msra.mxu0 %v264
        %427 = vmatprep.subr.mxu0 0.0
        %428 = vmatpush1.msra.mxu0 %v265
        %429 = vmatprep.mubr.f32.mxu0 %v292
        %430 = vmatmul.mubr.f32.gmra.mrb[0].mxu0 %v200
        %v431 = vpop.f32.mrb[0].mxu0
        %v432 = vadd.f32 %v362, %v431
        %v433 = vpop.f32.mrb[0].mxu0
        %434 = vdwg.mxu0
        %435 = vmatprep.subr.mxu0 0.0
        %436 = vmatpush1.msra.mxu0 %v266
        %437 = vmatprep.subr.mxu0 0.0
        %438 = vmatpush1.msra.mxu0 %v267
        %439 = vmatprep.subr.mxu0 0.0
        %440 = vmatpush1.msra.mxu0 %v268
        %441 = vmatprep.subr.mxu0 0.0
        %442 = vmatpush1.msra.mxu0 %v269
        %443 = vmatprep.subr.mxu0 0.0
        %444 = vmatpush1.msra.mxu0 %v270
        %445 = vmatprep.subr.mxu0 0.0
        %446 = vmatpush1.msra.mxu0 %v271
        %447 = vmatprep.subr.mxu0 0.0
        %448 = vmatpush1.msra.mxu0 %v272
        %449 = vmatprep.subr.mxu0 0.0
        %450 = vmatpush1.msra.mxu0 %v273
        %451 = vmatprep.subr.mxu0 0.0
        %452 = vmatpush1.msra.mxu0 %v274
        %453 = vmatprep.subr.mxu0 0.0
        %454 = vmatpush1.msra.mxu0 %v275
        %455 = vmatprep.subr.mxu0 0.0
        %456 = vmatpush1.msra.mxu0 %v276
        %457 = vmatprep.subr.mxu0 0.0
        %458 = vmatpush1.msra.mxu0 %v277
        %459 = vmatprep.subr.mxu0 0.0
        %460 = vmatpush1.msra.mxu0 %v278
        %461 = vmatprep.subr.mxu0 0.0
        %462 = vmatpush1.msra.mxu0 %v279
        %463 = vmatprep.subr.mxu0 0.0
        %464 = vmatpush1.msra.mxu0 %v280
        %465 = vmatprep.subr.mxu0 0.0
        %466 = vmatpush1.msra.mxu0 %v281
        %467 = vmatprep.subr.mxu0 0.0
        %468 = vmatpush1.msra.mxu0 0.0
        %469 = vmatprep.subr.mxu0 0.0
        %470 = vmatpush1.msra.mxu0 0.0
        %471 = vmatprep.subr.mxu0 0.0
        %472 = vmatpush1.msra.mxu0 0.0
        %473 = vmatprep.subr.mxu0 0.0
        %474 = vmatpush1.msra.mxu0 0.0
        %475 = vmatprep.subr.mxu0 0.0
        %476 = vmatpush1.msra.mxu0 0.0
        %477 = vmatprep.subr.mxu0 0.0
        %478 = vmatpush1.msra.mxu0 0.0
        %479 = vmatprep.subr.mxu0 0.0
        %480 = vmatpush1.msra.mxu0 0.0
        %481 = vmatprep.subr.mxu0 0.0
        %482 = vmatpush1.msra.mxu0 0.0
        %483 = vmatprep.subr.mxu0 0.0
        %484 = vmatpush1.msra.mxu0 0.0
        %485 = vmatprep.subr.mxu0 0.0
        %486 = vmatpush1.msra.mxu0 0.0
        %487 = vmatprep.subr.mxu0 0.0
        %488 = vmatpush1.msra.mxu0 0.0
        %489 = vmatprep.subr.mxu0 0.0
        %490 = vmatpush1.msra.mxu0 0.0
        %491 = vmatprep.subr.mxu0 0.0
        %492 = vmatpush1.msra.mxu0 0.0
        %493 = vmatprep.subr.mxu0 0.0
        %494 = vmatpush1.msra.mxu0 0.0
        %495 = vmatprep.subr.mxu0 0.0
        %496 = vmatpush1.msra.mxu0 0.0
        %497 = vmatprep.subr.mxu0 0.0
        %498 = vmatpush1.msra.mxu0 0.0
        %499 = vmatprep.mubr.f32.mxu0 0.0
        %500 = vmatmul.mubr.f32.gmra.mrb[0].mxu0 %v201
        %v501 = vpop.f32.mrb[0].mxu0
        %v502 = vadd.f32 %v432, %v501
        %v503 = vpop.f32.mrb[0].mxu0
        %504 = vdwg.mxu0
        %v505 = vmax.f32 %v502, 0.0
        %s506 = smul.u32 %s22, 4
        %v507 = vlaneseq
        %v508 = vshrl.u32 %v507, 7
        %v509 = vstv %s506
        %v510 = vadd.s32 %v509, %v508
        %vm511 = vcmp.lt.s32.totalorder %v510, 4
        %v512 = vsel %vm511, 1, 0
        %vm513 = vcmp.eq.s32.totalorder %v512, 1
        %v514 = vsel %vm513, %v505, 0.0
        %v515 = vld [vmem:[#allocation2] sm:$0x1]
        %vm516 = vcmask 1043456
        %v517 = vsel %vm516, %v514, 0.0
        %v518 = vrot.slane %v517, 4
        %v519 = vadd.f32 %v517, %v518
        %v520 = vrot.slane %v519, 2
        %v521 = vadd.f32 %v519, %v520
        %v522 = vrot.slane %v521, 1
        %v523 = vadd.f32 %v521, %v522
        %v524 = vadd.f32 %v515, %v523
        %525 = vst [vmem:[#allocation2] sm:$0x1] %v524
        // Predicated region
        $region37: #{style_encoder_forward.5} parent=31 // pred_check
          %p526 = pneg %p194
        $region38: #{style_encoder_forward.5} parent=31 // pred_check_branch
          %528 = sbr.rel (%p526) target = $region40
        $region39: #{style_encoder_forward.5} parent=31 // pred_region
          %v529 = vld [vmem:[#allocation2] sm:$0x1]
          %v530 = vmul.f32 %v529, 0.25
          %531 = vst [vmem:[%s184] sm:$0x1] %v530
        $region40: #{style_encoder_forward.5} parent=31 // pred_fallthru
          _
        %s532 = sand.u32 %s107, 1
        %s533 = scalar_lea.sflag [#allocation4], %s532
        %s534 = sand.u32 %s107, 1
        %s535 = scalar_lea.vmem [#allocation3], %s534
        // Predicated region
        $region41: #{style_encoder_forward.5} parent=31 // pred_check
          %p536 = pneg %p117
        $region42: #{style_encoder_forward.5} parent=31 // pred_check_branch
          %538 = sbr.rel (%p536) target = $region44
        $region43: #{style_encoder_forward.5} parent=31 // pred_region
          %s540 = ssub.s32 16, 16
          %541 = vsyncadd %s533, %s540
          %s542 = smul.addr %s21, 16
          %s543 = scalar_lea.hbm %s3, %s542
          %s545 = sshll.u32 %s535, 4
          %s546 = int_to_ptr.vmem [resolvable:$true] %s545
          %548 = dma.vmem_to_hbm [thread:$0]  %s546, 16, %s543, %s533
        $region44: #{style_encoder_forward.5} parent=31 // pred_fallthru
          _
      $region32: #{style_encoder_forward.5} parent=5 // pred_fallthru
        _
      %p549 = scmp.le.s32.totalorder 2, %s12
      // Predicated region
      $region45: #{style_encoder_forward.5} parent=5 // pred_check
        %p550 = pneg %p549
      $region46: #{style_encoder_forward.5} parent=5 // pred_check_branch
        %552 = sbr.rel (%p550) target = $region48
      $region47: #{style_encoder_forward.5} parent=5 // pred_region
        %s553 = ssub.s32 %s12, 2
        // Predicated region
        $region49: #{style_encoder_forward.5} parent=47 // pred_check
          %p554 = pneg %p123
        $region50: #{style_encoder_forward.5} parent=47 // pred_check_branch
          %556 = sbr.rel (%p554) target = $region52
        $region51: #{style_encoder_forward.5} parent=47 // pred_region
          %s557 = sand.u32 %s108, 1
          %s558 = scalar_lea.sflag [#allocation4], %s557
          %s559 = sand.u32 %s108, 1
          %s560 = scalar_lea.vmem [#allocation3], %s559
          %561 = dma.done %s558, 16
        $region52: #{style_encoder_forward.5} parent=47 // pred_fallthru
          _
      $region48: #{style_encoder_forward.5} parent=5 // pred_fallthru
        _
    $region6: #{style_encoder_forward.5} parent=1 // loop_footer
      %s16 = sadd.s32 1, %s12
    $region7: #{style_encoder_forward.5} parent=1 // loop_footer_branch
      %11 = sbr.rel target = $region3
    $region8: #{style_encoder_forward.5} parent=1 // loop_exit
      _
    %562 = vsyncpa [#allocation4], 1
    %s563 = scalar_lea.sflag [#allocation4], 1
    %564 = vsyncpa %s563, 1

</llo_original>
